<compile_context>
chip_gen: v7x
topology: tpu7x:2x2x1
jax: 0.10.0
libtpu: 0.0.40
codegen_flags: <defaults>
</compile_context>

<pallas_src>
import functools
from typing import NamedTuple

import jax
import jax.numpy as jnp
from jax.experimental import pallas as pl
from jax.experimental.pallas import tpu as pltpu


def _round8(n: int) -> int:
    return -(-n // 8) * 8


class _SlabLayout(NamedTuple):
    wih0: int   # (I,  4H) layer-0 input weights
    whh0: int   # (H,  4H) layer-0 recurrent weights
    b0: int     # (1,  4H) layer-0 folded bias (ih + hh)
    w1: int     # (2H, 4H) layer-1 fused [W_ih1; W_hh1]
    b1: int     # (1,  4H) layer-1 folded bias
    head: int   # (1,  4H) lanes [0, H): reg weight row, lane H: reg bias
    rows: int   # total slab rows (8-aligned)


def _slab_layout(input_size: int, hidden_size: int) -> _SlabLayout:
    I, H = input_size, hidden_size
    wih0 = 0
    whh0 = wih0 + _round8(I)
    b0 = whh0 + _round8(H)
    w1 = b0 + 8
    b1 = w1 + _round8(2 * H)
    head = b1 + 8
    rows = _round8(head + 1)
    return _SlabLayout(wih0, whh0, b0, w1, b1, head, rows)


def lstm_reg_kernel(x_ref, w_ref, out_ref, *,
                    seq_len, batch, input_size, hidden_size):
    S, Bp, I, H = seq_len, batch, input_size, hidden_size
    G = 4 * H
    lay = _slab_layout(I, H)

    # --- Weights: one packed slab, loaded once (hoisted out of the time loop).
    #     All row offsets are static and 8-aligned.
    wih0 = w_ref[lay.wih0:lay.wih0 + I, :]            # (I, 4H)
    whh0 = w_ref[lay.whh0:lay.whh0 + H, :]            # (H, 4H)
    b0 = w_ref[lay.b0:lay.b0 + 1, :]                  # (1, 4H)
    w1 = w_ref[lay.w1:lay.w1 + 2 * H, :]              # (2H, 4H) = [W_ih1; W_hh1]
    b1 = w_ref[lay.b1:lay.b1 + 1, :]                  # (1, 4H)
    wrow = w_ref[lay.head:lay.head + 1, 0:H]          # (1, H)  reg weight (row)
    breg = w_ref[lay.head:lay.head + 1, H:H + 1]      # (1, 1)  reg bias

    # --- Hoisted broadcasts (JAX does not CSE broadcast_in_dim inside loops).
    b1b = jnp.broadcast_to(b1, (Bp, G))               # (Bp, 4H)
    wrow_b = jnp.broadcast_to(wrow, (Bp, H))          # (Bp, H)
    breg_b = jnp.broadcast_to(breg, (Bp, 1))          # (Bp, 1)

    # --- Layer-0 input projection for every timestep in one MXU call,
    #     with b0 folded in.  Removes S matmuls from the recurrent chain.
    xproj = jnp.dot(x_ref[...], wih0,
                    preferred_element_type=jnp.float32) + b0   # (S*Bp, 4H)

    def lstm_cell(gates, c):
        # Full-vreg activations: one sigmoid + one tanh over (Bp, 4H);
        # gate chunks sliced afterwards.  PyTorch gate order [i, f, g, o].
        sg = jax.nn.sigmoid(gates)
        tg = jnp.tanh(gates)
        i_g = sg[:, 0 * H:1 * H]
        f_g = sg[:, 1 * H:2 * H]
        g_g = tg[:, 2 * H:3 * H]
        o_g = sg[:, 3 * H:4 * H]
        c_new = f_g * c + i_g * g_g
        h_new = o_g * jnp.tanh(c_new)
        return h_new, c_new

    z = jnp.zeros((Bp, H), jnp.float32)
    h0, c0, h1, c1 = z, z, z, z

    # Statically unrolled recurrence (S is small); all state stays in vregs.
    for t in range(S):
        # Layer 0: hoisted input projection + one recurrent matmul.
        g0 = xproj[t * Bp:(t + 1) * Bp, :] + jnp.dot(
            h0, whh0, preferred_element_type=jnp.float32)
        h0, c0 = lstm_cell(g0, c0)

        # Layer 1: single fused matmul over the lane-concat [h0 | h1].
        xh = jnp.concatenate([h0, h1], axis=-1)       # (Bp, 2H)
        g1 = jnp.dot(xh, w1, preferred_element_type=jnp.float32) + b1b
        h1, c1 = lstm_cell(g1, c1)

        # Regression head (O == 1): VPU broadcast-mul + lane reduce -- keeps
        # the MXU free and stays off the recurrent dependence chain.
        y_t = jnp.sum(h1 * wrow_b, axis=-1, keepdims=True) + breg_b   # (Bp, 1)
        out_ref[:, t:t + 1] = y_t.astype(out_ref.dtype)

    # out_ref is a dense (Bp, S) slab -> one lane-dense output DMA; the
    # wrapper transposes it back to (S, B, 1).


def pack_params(params, input_size, hidden_size, output_size=1):
    """Pack all weights/biases into one (rows, 4H) f32 slab (single input DMA)."""
    I, H, O = input_size, hidden_size, output_size
    assert 4 * H == 128, "kernel assumes the 4H gate vector is exactly one f32 vreg"
    assert O == 1, "regression head is specialised to a single output"
    lay = _slab_layout(I, H)
    slab = jnp.zeros((lay.rows, 4 * H), jnp.float32)
    slab = slab.at[lay.wih0:lay.wih0 + I, :].set(params["wih0"])
    slab = slab.at[lay.whh0:lay.whh0 + H, :].set(params["whh0"])
    slab = slab.at[lay.b0:lay.b0 + 1, :].set(params["b0"])
    w1 = jnp.concatenate([params["wih1"], params["whh1"]], axis=0)   # (2H, 4H)
    slab = slab.at[lay.w1:lay.w1 + 2 * H, :].set(w1)
    slab = slab.at[lay.b1:lay.b1 + 1, :].set(params["b1"])
    slab = slab.at[lay.head, 0:H].set(params["wreg"][:, 0])
    slab = slab.at[lay.head, H].set(params["breg"][0, 0])
    return slab


def lstm_reg_forward(x, wslab, *, hidden_size):
    """x: (S, B, input_size) float32.  Returns (S, B, 1)."""
    S, B, I = x.shape
    H = hidden_size

    # Pad batch to a sublane multiple (8) so every (B, .) f32 tile fills its
    # vreg sublanes; padded rows are computed but sliced off afterwards.
    Bp = _round8(B)
    if Bp != B:
        x = jnp.pad(x, ((0, 0), (0, Bp - B), (0, 0)))
    # Time-major flatten is contiguous -> pure layout plumbing in the wrapper,
    # so the kernel never has to reshape a VMEM-tiled (S, Bp, I) array.
    x2d = x.reshape(S * Bp, I)

    kernel = functools.partial(
        lstm_reg_kernel, seq_len=S, batch=Bp, input_size=I, hidden_size=H)

    grid_spec = pltpu.PrefetchScalarGridSpec(
        num_scalar_prefetch=0,
        grid=(1,),   # single invocation: the recurrence lives inside the kernel
        in_specs=[
            pl.BlockSpec((S * Bp, I), lambda i: (0, 0)),    # whole x, one DMA
            pl.BlockSpec(wslab.shape, lambda i: (0, 0)),    # packed weights, one DMA
        ],
        out_specs=pl.BlockSpec((Bp, S), lambda i: (0, 0)),
    )

    y = pl.pallas_call(
        kernel,
        out_shape=jax.ShapeDtypeStruct((Bp, S), jnp.float32),
        grid_spec=grid_spec,
        compiler_params=pltpu.CompilerParams(
            dimension_semantics=("arbitrary",)),
    )(x2d, wslab)

    # (Bp, S) -> (S, B, 1)
    return jnp.transpose(y[:B, :])[:, :, None]


def make_params(key, input_size, hidden_size, output_size):
    """Deterministic synthetic parameters, mirroring nn.LSTM / nn.Linear shapes.

    PyTorch shapes:
      weight_ih_l0: (4H, I), weight_hh_l0: (4H, H), bias_*_l0: (4H,)
      weight_ih_l1: (4H, H), weight_hh_l1: (4H, H), bias_*_l1: (4H,)
      reg.weight:   (O, H),  reg.bias: (O,)
    Every weight is pre-transposed and the two LSTM biases are folded together,
    so every matmul in the kernel is a plain (B, K) @ (K, N) dot.
    """
    H, I, O = hidden_size, input_size, output_size
    ks = jax.random.split(key, 10)
    scale = 1.0 / jnp.sqrt(jnp.float32(H))

    def u(k, shape):
        return jax.random.uniform(k, shape, jnp.float32, -scale, scale)

    params = {
        "wih0": u(ks[0], (4 * H, I)).T,                               # (I, 4H)
        "whh0": u(ks[1], (4 * H, H)).T,                               # (H, 4H)
        "b0":   (u(ks[2], (4 * H,)) + u(ks[3], (4 * H,)))[None, :],   # (1, 4H)
        "wih1": u(ks[4], (4 * H, H)).T,                               # (H, 4H)
        "whh1": u(ks[5], (4 * H, H)).T,                               # (H, 4H)
        "b1":   (u(ks[6], (4 * H,)) + u(ks[7], (4 * H,)))[None, :],   # (1, 4H)
        "wreg": u(ks[8], (O, H)).T,                                   # (H, O)
        "breg": u(ks[9], (O,))[None, :],                              # (1, O)
    }
    return params


def lstm_reg_reference(x, params):
    """Pure-JAX reference (same math) for a correctness check."""
    S, B, I = x.shape
    H = params["whh0"].shape[0]

    def cell(x_in, h, c, wih, whh, b):
        gates = x_in @ wih + h @ whh + b
        i_g = jax.nn.sigmoid(gates[:, 0 * H:1 * H])
        f_g = jax.nn.sigmoid(gates[:, 1 * H:2 * H])
        g_g = jnp.tanh(gates[:, 2 * H:3 * H])
        o_g = jax.nn.sigmoid(gates[:, 3 * H:4 * H])
        c_new = f_g * c + i_g * g_g
        return o_g * jnp.tanh(c_new), c_new

    def step(carry, x_t):
        h0, c0, h1, c1 = carry
        h0, c0 = cell(x_t, h0, c0, params["wih0"], params["whh0"], params["b0"])
        h1, c1 = cell(h0, h1, c1, params["wih1"], params["whh1"], params["b1"])
        return (h0, c0, h1, c1), h1

    zeros = jnp.zeros((B, H), jnp.float32)
    _, hs = jax.lax.scan(step, (zeros, zeros, zeros, zeros), x)
    return hs @ params["wreg"] + params["breg"]  # (S, B, O)


if __name__ == "__main__":
    SEQ, BATCH, INPUT, HIDDEN, OUT = 8, 4, 8, 32, 1

    key = jax.random.PRNGKey(0)
    kx, kp = jax.random.split(key)
    x = jax.random.normal(kx, (SEQ, BATCH, INPUT), jnp.float32)
    params = make_params(kp, INPUT, HIDDEN, OUT)
    wslab = pack_params(params, INPUT, HIDDEN, OUT)

    y = lstm_reg_forward(x, wslab, hidden_size=HIDDEN)
    y = jax.block_until_ready(y)

    y_ref = lstm_reg_reference(x, params)
    assert y.shape == (SEQ, BATCH, OUT)
    assert jnp.allclose(y, y_ref, atol=1e-5, rtol=1e-5)

    print("KERNEL_OK")
</pallas_src>

<mosaic_0001>
module attributes {stable_mosaic.version = 11 : i64} {
  func.func @lstm_reg_kernel(%arg0: i32, %arg1: memref<64x8xf32, #tpu.memory_space<vmem>>, %arg2: memref<128x128xf32, #tpu.memory_space<vmem>>, %arg3: memref<8x8xf32, #tpu.memory_space<vmem>>) attributes {dimension_semantics = [#tpu.dimension_semantics<arbitrary>], iteration_bounds = array<i64: 1>, scalar_prefetch = 0 : i64, scratch_operands = 0 : i64, tpu.core_type = #tpu.core_type<tc>, window_params = [{pipeline_mode = #tpu.pipeline_mode<synchronous>, transform_indices = @transform_0, window_bounds = array<i64: 64, 8>}, {pipeline_mode = #tpu.pipeline_mode<synchronous>, transform_indices = @transform_1, window_bounds = array<i64: 128, 128>}, {pipeline_mode = #tpu.pipeline_mode<synchronous>, transform_indices = @transform_2, window_bounds = array<i64: 8, 8>}]} {
    %c0 = arith.constant 0 : index
    %c0_0 = arith.constant 0 : index
    %0 = vector.load %arg2[%c0, %c0_0] : memref<128x128xf32, #tpu.memory_space<vmem>>, vector<8x128xf32>
    %c8 = arith.constant 8 : index
    %c0_1 = arith.constant 0 : index
    %1 = vector.load %arg2[%c8, %c0_1] : memref<128x128xf32, #tpu.memory_space<vmem>>, vector<32x128xf32>
    %c40 = arith.constant 40 : index
    %c0_2 = arith.constant 0 : index
    %2 = vector.load %arg2[%c40, %c0_2] : memref<128x128xf32, #tpu.memory_space<vmem>>, vector<1x128xf32>
    %c48 = arith.constant 48 : index
    %c0_3 = arith.constant 0 : index
    %3 = vector.load %arg2[%c48, %c0_3] : memref<128x128xf32, #tpu.memory_space<vmem>>, vector<64x128xf32>
    %c112 = arith.constant 112 : index
    %c0_4 = arith.constant 0 : index
    %4 = vector.load %arg2[%c112, %c0_4] : memref<128x128xf32, #tpu.memory_space<vmem>>, vector<1x128xf32>
    %c120 = arith.constant 120 : index
    %c0_5 = arith.constant 0 : index
    %5 = vector.load %arg2[%c120, %c0_5] : memref<128x128xf32, #tpu.memory_space<vmem>>, vector<1x32xf32>
    %c120_6 = arith.constant 120 : index
    %c32 = arith.constant 32 : index
    %6 = vector.load %arg2[%c120_6, %c32] : memref<128x128xf32, #tpu.memory_space<vmem>>, vector<1x1xf32>
    %7 = vector.shape_cast %4 : vector<1x128xf32> to vector<1x128xf32>
    %8 = vector.broadcast %7 : vector<1x128xf32> to vector<8x128xf32>
    %9 = vector.shape_cast %5 : vector<1x32xf32> to vector<1x32xf32>
    %10 = vector.broadcast %9 : vector<1x32xf32> to vector<8x32xf32>
    %11 = vector.shape_cast %6 : vector<1x1xf32> to vector<1x1xf32>
    %12 = vector.broadcast %11 : vector<1x1xf32> to vector<8x1xf32>
    %c0_7 = arith.constant 0 : index
    %c0_8 = arith.constant 0 : index
    %13 = vector.load %arg1[%c0_7, %c0_8] : memref<64x8xf32, #tpu.memory_space<vmem>>, vector<64x8xf32>
    %cst = arith.constant dense<0.000000e+00> : vector<64x128xf32>
    %14 = tpu.matmul %13, %0, %cst {dimension_numbers = #tpu.dot_dimension_numbers<[1], [0], [0], [1], [0, 0, 1, 1], [], []>} : vector<64x8xf32>, vector<8x128xf32>, vector<64x128xf32> -> vector<64x128xf32>
    %15 = vector.broadcast %2 : vector<1x128xf32> to vector<64x128xf32>
    %16 = arith.addf %14, %15 : vector<64x128xf32>
    %cst_9 = arith.constant 0.000000e+00 : f32
    %17 = vector.broadcast %cst_9 : f32 to vector<8x32xf32>
    %18 = vector.extract_strided_slice %16 {offsets = [0, 0], sizes = [8, 128], strides = [1, 1]} : vector<64x128xf32> to vector<8x128xf32>
    %cst_10 = arith.constant dense<0.000000e+00> : vector<8x128xf32>
    %19 = tpu.matmul %17, %1, %cst_10 {dimension_numbers = #tpu.dot_dimension_numbers<[1], [0], [0], [1], [0, 0, 1, 1], [], []>} : vector<8x32xf32>, vector<32x128xf32>, vector<8x128xf32> -> vector<8x128xf32>
    %20 = arith.addf %18, %19 : vector<8x128xf32>
    %21 = arith.negf %20 : vector<8x128xf32>
    %22 = math.exp %21 : vector<8x128xf32>
    %cst_11 = arith.constant 1.000000e+00 : f32
    %23 = vector.broadcast %cst_11 : f32 to vector<8x128xf32>
    %24 = arith.addf %23, %22 : vector<8x128xf32>
    %25 = arith.divf %23, %24 : vector<8x128xf32>
    %26 = math.tanh %20 : vector<8x128xf32>
    %27 = vector.extract_strided_slice %25 {offsets = [0, 0], sizes = [8, 32], strides = [1, 1]} : vector<8x128xf32> to vector<8x32xf32>
    %28 = vector.extract_strided_slice %25 {offsets = [0, 32], sizes = [8, 32], strides = [1, 1]} : vector<8x128xf32> to vector<8x32xf32>
    %29 = vector.extract_strided_slice %26 {offsets = [0, 64], sizes = [8, 32], strides = [1, 1]} : vector<8x128xf32> to vector<8x32xf32>
    %30 = vector.extract_strided_slice %25 {offsets = [0, 96], sizes = [8, 32], strides = [1, 1]} : vector<8x128xf32> to vector<8x32xf32>
    %31 = arith.mulf %28, %17 : vector<8x32xf32>
    %32 = arith.mulf %27, %29 : vector<8x32xf32>
    %33 = arith.addf %31, %32 : vector<8x32xf32>
    %34 = math.tanh %33 : vector<8x32xf32>
    %35 = arith.mulf %30, %34 : vector<8x32xf32>
    %36 = tpu.concatenate %35, %17 in 1 : vector<8x32xf32>, vector<8x32xf32> -> vector<8x64xf32>
    %cst_12 = arith.constant dense<0.000000e+00> : vector<8x128xf32>
    %37 = tpu.matmul %36, %3, %cst_12 {dimension_numbers = #tpu.dot_dimension_numbers<[1], [0], [0], [1], [0, 0, 1, 1], [], []>} : vector<8x64xf32>, vector<64x128xf32>, vector<8x128xf32> -> vector<8x128xf32>
    %38 = arith.addf %37, %8 : vector<8x128xf32>
    %39 = arith.negf %38 : vector<8x128xf32>
    %40 = math.exp %39 : vector<8x128xf32>
    %cst_13 = arith.constant 1.000000e+00 : f32
    %41 = vector.broadcast %cst_13 : f32 to vector<8x128xf32>
    %42 = arith.addf %41, %40 : vector<8x128xf32>
    %43 = arith.divf %41, %42 : vector<8x128xf32>
    %44 = math.tanh %38 : vector<8x128xf32>
    %45 = vector.extract_strided_slice %43 {offsets = [0, 0], sizes = [8, 32], strides = [1, 1]} : vector<8x128xf32> to vector<8x32xf32>
    %46 = vector.extract_strided_slice %43 {offsets = [0, 32], sizes = [8, 32], strides = [1, 1]} : vector<8x128xf32> to vector<8x32xf32>
    %47 = vector.extract_strided_slice %44 {offsets = [0, 64], sizes = [8, 32], strides = [1, 1]} : vector<8x128xf32> to vector<8x32xf32>
    %48 = vector.extract_strided_slice %43 {offsets = [0, 96], sizes = [8, 32], strides = [1, 1]} : vector<8x128xf32> to vector<8x32xf32>
    %49 = arith.mulf %46, %17 : vector<8x32xf32>
    %50 = arith.mulf %45, %47 : vector<8x32xf32>
    %51 = arith.addf %49, %50 : vector<8x32xf32>
    %52 = math.tanh %51 : vector<8x32xf32>
    %53 = arith.mulf %48, %52 : vector<8x32xf32>
    %54 = arith.mulf %53, %10 : vector<8x32xf32>
    %cst_14 = arith.constant dense<0.000000e+00> : vector<8xf32>
    %55 = vector.multi_reduction <add>, %54, %cst_14 [1] : vector<8x32xf32> to vector<8xf32>
    %56 = vector.shape_cast %55 : vector<8xf32> to vector<8x1xf32>
    %57 = arith.addf %56, %12 : vector<8x1xf32>
    %c0_15 = arith.constant 0 : index
    %c0_16 = arith.constant 0 : index
    %58 = vector.load %arg3[%c0_15, %c0_16] : memref<8x8xf32, #tpu.memory_space<vmem>>, vector<8x1xf32>
    tpu.vector_store %arg3[%c0_15, %c0_16], %57 {strides = array<i32>} : memref<8x8xf32, #tpu.memory_space<vmem>>, vector<8x1xf32>,
    %59 = vector.extract_strided_slice %16 {offsets = [8, 0], sizes = [8, 128], strides = [1, 1]} : vector<64x128xf32> to vector<8x128xf32>
    %cst_17 = arith.constant dense<0.000000e+00> : vector<8x128xf32>
    %60 = tpu.matmul %35, %1, %cst_17 {dimension_numbers = #tpu.dot_dimension_numbers<[1], [0], [0], [1], [0, 0, 1, 1], [], []>} : vector<8x32xf32>, vector<32x128xf32>, vector<8x128xf32> -> vector<8x128xf32>
    %61 = arith.addf %59, %60 : vector<8x128xf32>
    %62 = arith.negf %61 : vector<8x128xf32>
    %63 = math.exp %62 : vector<8x128xf32>
    %cst_18 = arith.constant 1.000000e+00 : f32
    %64 = vector.broadcast %cst_18 : f32 to vector<8x128xf32>
    %65 = arith.addf %64, %63 : vector<8x128xf32>
    %66 = arith.divf %64, %65 : vector<8x128xf32>
    %67 = math.tanh %61 : vector<8x128xf32>
    %68 = vector.extract_strided_slice %66 {offsets = [0, 0], sizes = [8, 32], strides = [1, 1]} : vector<8x128xf32> to vector<8x32xf32>
    %69 = vector.extract_strided_slice %66 {offsets = [0, 32], sizes = [8, 32], strides = [1, 1]} : vector<8x128xf32> to vector<8x32xf32>
    %70 = vector.extract_strided_slice %67 {offsets = [0, 64], sizes = [8, 32], strides = [1, 1]} : vector<8x128xf32> to vector<8x32xf32>
    %71 = vector.extract_strided_slice %66 {offsets = [0, 96], sizes = [8, 32], strides = [1, 1]} : vector<8x128xf32> to vector<8x32xf32>
    %72 = arith.mulf %69, %33 : vector<8x32xf32>
    %73 = arith.mulf %68, %70 : vector<8x32xf32>
    %74 = arith.addf %72, %73 : vector<8x32xf32>
    %75 = math.tanh %74 : vector<8x32xf32>
    %76 = arith.mulf %71, %75 : vector<8x32xf32>
    %77 = tpu.concatenate %76, %53 in 1 : vector<8x32xf32>, vector<8x32xf32> -> vector<8x64xf32>
    %cst_19 = arith.constant dense<0.000000e+00> : vector<8x128xf32>
    %78 = tpu.matmul %77, %3, %cst_19 {dimension_numbers = #tpu.dot_dimension_numbers<[1], [0], [0], [1], [0, 0, 1, 1], [], []>} : vector<8x64xf32>, vector<64x128xf32>, vector<8x128xf32> -> vector<8x128xf32>
    %79 = arith.addf %78, %8 : vector<8x128xf32>
    %80 = arith.negf %79 : vector<8x128xf32>
    %81 = math.exp %80 : vector<8x128xf32>
    %cst_20 = arith.constant 1.000000e+00 : f32
    %82 = vector.broadcast %cst_20 : f32 to vector<8x128xf32>
    %83 = arith.addf %82, %81 : vector<8x128xf32>
    %84 = arith.divf %82, %83 : vector<8x128xf32>
    %85 = math.tanh %79 : vector<8x128xf32>
    %86 = vector.extract_strided_slice %84 {offsets = [0, 0], sizes = [8, 32], strides = [1, 1]} : vector<8x128xf32> to vector<8x32xf32>
    %87 = vector.extract_strided_slice %84 {offsets = [0, 32], sizes = [8, 32], strides = [1, 1]} : vector<8x128xf32> to vector<8x32xf32>
    %88 = vector.extract_strided_slice %85 {offsets = [0, 64], sizes = [8, 32], strides = [1, 1]} : vector<8x128xf32> to vector<8x32xf32>
    %89 = vector.extract_strided_slice %84 {offsets = [0, 96], sizes = [8, 32], strides = [1, 1]} : vector<8x128xf32> to vector<8x32xf32>
    %90 = arith.mulf %87, %51 : vector<8x32xf32>
    %91 = arith.mulf %86, %88 : vector<8x32xf32>
    %92 = arith.addf %90, %91 : vector<8x32xf32>
    %93 = math.tanh %92 : vector<8x32xf32>
    %94 = arith.mulf %89, %93 : vector<8x32xf32>
    %95 = arith.mulf %94, %10 : vector<8x32xf32>
    %cst_21 = arith.constant dense<0.000000e+00> : vector<8xf32>
    %96 = vector.multi_reduction <add>, %95, %cst_21 [1] : vector<8x32xf32> to vector<8xf32>
    %97 = vector.shape_cast %96 : vector<8xf32> to vector<8x1xf32>
    %98 = arith.addf %97, %12 : vector<8x1xf32>
    %c0_22 = arith.constant 0 : index
    %c1 = arith.constant 1 : index
    %99 = vector.load %arg3[%c0_22, %c1] : memref<8x8xf32, #tpu.memory_space<vmem>>, vector<8x1xf32>
    tpu.vector_store %arg3[%c0_22, %c1], %98 {strides = array<i32>} : memref<8x8xf32, #tpu.memory_space<vmem>>, vector<8x1xf32>,
    %100 = vector.extract_strided_slice %16 {offsets = [16, 0], sizes = [8, 128], strides = [1, 1]} : vector<64x128xf32> to vector<8x128xf32>
    %cst_23 = arith.constant dense<0.000000e+00> : vector<8x128xf32>
    %101 = tpu.matmul %76, %1, %cst_23 {dimension_numbers = #tpu.dot_dimension_numbers<[1], [0], [0], [1], [0, 0, 1, 1], [], []>} : vector<8x32xf32>, vector<32x128xf32>, vector<8x128xf32> -> vector<8x128xf32>
    %102 = arith.addf %100, %101 : vector<8x128xf32>
    %103 = arith.negf %102 : vector<8x128xf32>
    %104 = math.exp %103 : vector<8x128xf32>
    %cst_24 = arith.constant 1.000000e+00 : f32
    %105 = vector.broadcast %cst_24 : f32 to vector<8x128xf32>
    %106 = arith.addf %105, %104 : vector<8x128xf32>
    %107 = arith.divf %105, %106 : vector<8x128xf32>
    %108 = math.tanh %102 : vector<8x128xf32>
    %109 = vector.extract_strided_slice %107 {offsets = [0, 0], sizes = [8, 32], strides = [1, 1]} : vector<8x128xf32> to vector<8x32xf32>
    %110 = vector.extract_strided_slice %107 {offsets = [0, 32], sizes = [8, 32], strides = [1, 1]} : vector<8x128xf32> to vector<8x32xf32>
    %111 = vector.extract_strided_slice %108 {offsets = [0, 64], sizes = [8, 32], strides = [1, 1]} : vector<8x128xf32> to vector<8x32xf32>
    %112 = vector.extract_strided_slice %107 {offsets = [0, 96], sizes = [8, 32], strides = [1, 1]} : vector<8x128xf32> to vector<8x32xf32>
    %113 = arith.mulf %110, %74 : vector<8x32xf32>
    %114 = arith.mulf %109, %111 : vector<8x32xf32>
    %115 = arith.addf %113, %114 : vector<8x32xf32>
    %116 = math.tanh %115 : vector<8x32xf32>
    %117 = arith.mulf %112, %116 : vector<8x32xf32>
    %118 = tpu.concatenate %117, %94 in 1 : vector<8x32xf32>, vector<8x32xf32> -> vector<8x64xf32>
    %cst_25 = arith.constant dense<0.000000e+00> : vector<8x128xf32>
    %119 = tpu.matmul %118, %3, %cst_25 {dimension_numbers = #tpu.dot_dimension_numbers<[1], [0], [0], [1], [0, 0, 1, 1], [], []>} : vector<8x64xf32>, vector<64x128xf32>, vector<8x128xf32> -> vector<8x128xf32>
    %120 = arith.addf %119, %8 : vector<8x128xf32>
    %121 = arith.negf %120 : vector<8x128xf32>
    %122 = math.exp %121 : vector<8x128xf32>
    %cst_26 = arith.constant 1.000000e+00 : f32
    %123 = vector.broadcast %cst_26 : f32 to vector<8x128xf32>
    %124 = arith.addf %123, %122 : vector<8x128xf32>
    %125 = arith.divf %123, %124 : vector<8x128xf32>
    %126 = math.tanh %120 : vector<8x128xf32>
    %127 = vector.extract_strided_slice %125 {offsets = [0, 0], sizes = [8, 32], strides = [1, 1]} : vector<8x128xf32> to vector<8x32xf32>
    %128 = vector.extract_strided_slice %125 {offsets = [0, 32], sizes = [8, 32], strides = [1, 1]} : vector<8x128xf32> to vector<8x32xf32>
    %129 = vector.extract_strided_slice %126 {offsets = [0, 64], sizes = [8, 32], strides = [1, 1]} : vector<8x128xf32> to vector<8x32xf32>
    %130 = vector.extract_strided_slice %125 {offsets = [0, 96], sizes = [8, 32], strides = [1, 1]} : vector<8x128xf32> to vector<8x32xf32>
    %131 = arith.mulf %128, %92 : vector<8x32xf32>
    %132 = arith.mulf %127, %129 : vector<8x32xf32>
    %133 = arith.addf %131, %132 : vector<8x32xf32>
    %134 = math.tanh %133 : vector<8x32xf32>
    %135 = arith.mulf %130, %134 : vector<8x32xf32>
    %136 = arith.mulf %135, %10 : vector<8x32xf32>
    %cst_27 = arith.constant dense<0.000000e+00> : vector<8xf32>
    %137 = vector.multi_reduction <add>, %136, %cst_27 [1] : vector<8x32xf32> to vector<8xf32>
    %138 = vector.shape_cast %137 : vector<8xf32> to vector<8x1xf32>
    %139 = arith.addf %138, %12 : vector<8x1xf32>
    %c0_28 = arith.constant 0 : index
    %c2 = arith.constant 2 : index
    %140 = vector.load %arg3[%c0_28, %c2] : memref<8x8xf32, #tpu.memory_space<vmem>>, vector<8x1xf32>
    tpu.vector_store %arg3[%c0_28, %c2], %139 {strides = array<i32>} : memref<8x8xf32, #tpu.memory_space<vmem>>, vector<8x1xf32>,
    %141 = vector.extract_strided_slice %16 {offsets = [24, 0], sizes = [8, 128], strides = [1, 1]} : vector<64x128xf32> to vector<8x128xf32>
    %cst_29 = arith.constant dense<0.000000e+00> : vector<8x128xf32>
    %142 = tpu.matmul %117, %1, %cst_29 {dimension_numbers = #tpu.dot_dimension_numbers<[1], [0], [0], [1], [0, 0, 1, 1], [], []>} : vector<8x32xf32>, vector<32x128xf32>, vector<8x128xf32> -> vector<8x128xf32>
    %143 = arith.addf %141, %142 : vector<8x128xf32>
    %144 = arith.negf %143 : vector<8x128xf32>
    %145 = math.exp %144 : vector<8x128xf32>
    %cst_30 = arith.constant 1.000000e+00 : f32
    %146 = vector.broadcast %cst_30 : f32 to vector<8x128xf32>
    %147 = arith.addf %146, %145 : vector<8x128xf32>
    %148 = arith.divf %146, %147 : vector<8x128xf32>
    %149 = math.tanh %143 : vector<8x128xf32>
    %150 = vector.extract_strided_slice %148 {offsets = [0, 0], sizes = [8, 32], strides = [1, 1]} : vector<8x128xf32> to vector<8x32xf32>
    %151 = vector.extract_strided_slice %148 {offsets = [0, 32], sizes = [8, 32], strides = [1, 1]} : vector<8x128xf32> to vector<8x32xf32>
    %152 = vector.extract_strided_slice %149 {offsets = [0, 64], sizes = [8, 32], strides = [1, 1]} : vector<8x128xf32> to vector<8x32xf32>
    %153 = vector.extract_strided_slice %148 {offsets = [0, 96], sizes = [8, 32], strides = [1, 1]} : vector<8x128xf32> to vector<8x32xf32>
    %154 = arith.mulf %151, %115 : vector<8x32xf32>
    %155 = arith.mulf %150, %152 : vector<8x32xf32>
    %156 = arith.addf %154, %155 : vector<8x32xf32>
    %157 = math.tanh %156 : vector<8x32xf32>
    %158 = arith.mulf %153, %157 : vector<8x32xf32>
    %159 = tpu.concatenate %158, %135 in 1 : vector<8x32xf32>, vector<8x32xf32> -> vector<8x64xf32>
    %cst_31 = arith.constant dense<0.000000e+00> : vector<8x128xf32>
    %160 = tpu.matmul %159, %3, %cst_31 {dimension_numbers = #tpu.dot_dimension_numbers<[1], [0], [0], [1], [0, 0, 1, 1], [], []>} : vector<8x64xf32>, vector<64x128xf32>, vector<8x128xf32> -> vector<8x128xf32>
    %161 = arith.addf %160, %8 : vector<8x128xf32>
    %162 = arith.negf %161 : vector<8x128xf32>
    %163 = math.exp %162 : vector<8x128xf32>
    %cst_32 = arith.constant 1.000000e+00 : f32
    %164 = vector.broadcast %cst_32 : f32 to vector<8x128xf32>
    %165 = arith.addf %164, %163 : vector<8x128xf32>
    %166 = arith.divf %164, %165 : vector<8x128xf32>
    %167 = math.tanh %161 : vector<8x128xf32>
    %168 = vector.extract_strided_slice %166 {offsets = [0, 0], sizes = [8, 32], strides = [1, 1]} : vector<8x128xf32> to vector<8x32xf32>
    %169 = vector.extract_strided_slice %166 {offsets = [0, 32], sizes = [8, 32], strides = [1, 1]} : vector<8x128xf32> to vector<8x32xf32>
    %170 = vector.extract_strided_slice %167 {offsets = [0, 64], sizes = [8, 32], strides = [1, 1]} : vector<8x128xf32> to vector<8x32xf32>
    %171 = vector.extract_strided_slice %166 {offsets = [0, 96], sizes = [8, 32], strides = [1, 1]} : vector<8x128xf32> to vector<8x32xf32>
    %172 = arith.mulf %169, %133 : vector<8x32xf32>
    %173 = arith.mulf %168, %170 : vector<8x32xf32>
    %174 = arith.addf %172, %173 : vector<8x32xf32>
    %175 = math.tanh %174 : vector<8x32xf32>
    %176 = arith.mulf %171, %175 : vector<8x32xf32>
    %177 = arith.mulf %176, %10 : vector<8x32xf32>
    %cst_33 = arith.constant dense<0.000000e+00> : vector<8xf32>
    %178 = vector.multi_reduction <add>, %177, %cst_33 [1] : vector<8x32xf32> to vector<8xf32>
    %179 = vector.shape_cast %178 : vector<8xf32> to vector<8x1xf32>
    %180 = arith.addf %179, %12 : vector<8x1xf32>
    %c0_34 = arith.constant 0 : index
    %c3 = arith.constant 3 : index
    %181 = vector.load %arg3[%c0_34, %c3] : memref<8x8xf32, #tpu.memory_space<vmem>>, vector<8x1xf32>
    tpu.vector_store %arg3[%c0_34, %c3], %180 {strides = array<i32>} : memref<8x8xf32, #tpu.memory_space<vmem>>, vector<8x1xf32>,
    %182 = vector.extract_strided_slice %16 {offsets = [32, 0], sizes = [8, 128], strides = [1, 1]} : vector<64x128xf32> to vector<8x128xf32>
    %cst_35 = arith.constant dense<0.000000e+00> : vector<8x128xf32>
    %183 = tpu.matmul %158, %1, %cst_35 {dimension_numbers = #tpu.dot_dimension_numbers<[1], [0], [0], [1], [0, 0, 1, 1], [], []>} : vector<8x32xf32>, vector<32x128xf32>, vector<8x128xf32> -> vector<8x128xf32>
    %184 = arith.addf %182, %183 : vector<8x128xf32>
    %185 = arith.negf %184 : vector<8x128xf32>
    %186 = math.exp %185 : vector<8x128xf32>
    %cst_36 = arith.constant 1.000000e+00 : f32
    %187 = vector.broadcast %cst_36 : f32 to vector<8x128xf32>
    %188 = arith.addf %187, %186 : vector<8x128xf32>
    %189 = arith.divf %187, %188 : vector<8x128xf32>
    %190 = math.tanh %184 : vector<8x128xf32>
    %191 = vector.extract_strided_slice %189 {offsets = [0, 0], sizes = [8, 32], strides = [1, 1]} : vector<8x128xf32> to vector<8x32xf32>
    %192 = vector.extract_strided_slice %189 {offsets = [0, 32], sizes = [8, 32], strides = [1, 1]} : vector<8x128xf32> to vector<8x32xf32>
    %193 = vector.extract_strided_slice %190 {offsets = [0, 64], sizes = [8, 32], strides = [1, 1]} : vector<8x128xf32> to vector<8x32xf32>
    %194 = vector.extract_strided_slice %189 {offsets = [0, 96], sizes = [8, 32], strides = [1, 1]} : vector<8x128xf32> to vector<8x32xf32>
    %195 = arith.mulf %192, %156 : vector<8x32xf32>
    %196 = arith.mulf %191, %193 : vector<8x32xf32>
    %197 = arith.addf %195, %196 : vector<8x32xf32>
    %198 = math.tanh %197 : vector<8x32xf32>
    %199 = arith.mulf %194, %198 : vector<8x32xf32>
    %200 = tpu.concatenate %199, %176 in 1 : vector<8x32xf32>, vector<8x32xf32> -> vector<8x64xf32>
    %cst_37 = arith.constant dense<0.000000e+00> : vector<8x128xf32>
    %201 = tpu.matmul %200, %3, %cst_37 {dimension_numbers = #tpu.dot_dimension_numbers<[1], [0], [0], [1], [0, 0, 1, 1], [], []>} : vector<8x64xf32>, vector<64x128xf32>, vector<8x128xf32> -> vector<8x128xf32>
    %202 = arith.addf %201, %8 : vector<8x128xf32>
    %203 = arith.negf %202 : vector<8x128xf32>
    %204 = math.exp %203 : vector<8x128xf32>
    %cst_38 = arith.constant 1.000000e+00 : f32
    %205 = vector.broadcast %cst_38 : f32 to vector<8x128xf32>
    %206 = arith.addf %205, %204 : vector<8x128xf32>
    %207 = arith.divf %205, %206 : vector<8x128xf32>
    %208 = math.tanh %202 : vector<8x128xf32>
    %209 = vector.extract_strided_slice %207 {offsets = [0, 0], sizes = [8, 32], strides = [1, 1]} : vector<8x128xf32> to vector<8x32xf32>
    %210 = vector.extract_strided_slice %207 {offsets = [0, 32], sizes = [8, 32], strides = [1, 1]} : vector<8x128xf32> to vector<8x32xf32>
    %211 = vector.extract_strided_slice %208 {offsets = [0, 64], sizes = [8, 32], strides = [1, 1]} : vector<8x128xf32> to vector<8x32xf32>
    %212 = vector.extract_strided_slice %207 {offsets = [0, 96], sizes = [8, 32], strides = [1, 1]} : vector<8x128xf32> to vector<8x32xf32>
    %213 = arith.mulf %210, %174 : vector<8x32xf32>
    %214 = arith.mulf %209, %211 : vector<8x32xf32>
    %215 = arith.addf %213, %214 : vector<8x32xf32>
    %216 = math.tanh %215 : vector<8x32xf32>
    %217 = arith.mulf %212, %216 : vector<8x32xf32>
    %218 = arith.mulf %217, %10 : vector<8x32xf32>
    %cst_39 = arith.constant dense<0.000000e+00> : vector<8xf32>
    %219 = vector.multi_reduction <add>, %218, %cst_39 [1] : vector<8x32xf32> to vector<8xf32>
    %220 = vector.shape_cast %219 : vector<8xf32> to vector<8x1xf32>
    %221 = arith.addf %220, %12 : vector<8x1xf32>
    %c0_40 = arith.constant 0 : index
    %c4 = arith.constant 4 : index
    %222 = vector.load %arg3[%c0_40, %c4] : memref<8x8xf32, #tpu.memory_space<vmem>>, vector<8x1xf32>
    tpu.vector_store %arg3[%c0_40, %c4], %221 {strides = array<i32>} : memref<8x8xf32, #tpu.memory_space<vmem>>, vector<8x1xf32>,
    %223 = vector.extract_strided_slice %16 {offsets = [40, 0], sizes = [8, 128], strides = [1, 1]} : vector<64x128xf32> to vector<8x128xf32>
    %cst_41 = arith.constant dense<0.000000e+00> : vector<8x128xf32>
    %224 = tpu.matmul %199, %1, %cst_41 {dimension_numbers = #tpu.dot_dimension_numbers<[1], [0], [0], [1], [0, 0, 1, 1], [], []>} : vector<8x32xf32>, vector<32x128xf32>, vector<8x128xf32> -> vector<8x128xf32>
    %225 = arith.addf %223, %224 : vector<8x128xf32>
    %226 = arith.negf %225 : vector<8x128xf32>
    %227 = math.exp %226 : vector<8x128xf32>
    %cst_42 = arith.constant 1.000000e+00 : f32
    %228 = vector.broadcast %cst_42 : f32 to vector<8x128xf32>
    %229 = arith.addf %228, %227 : vector<8x128xf32>
    %230 = arith.divf %228, %229 : vector<8x128xf32>
    %231 = math.tanh %225 : vector<8x128xf32>
    %232 = vector.extract_strided_slice %230 {offsets = [0, 0], sizes = [8, 32], strides = [1, 1]} : vector<8x128xf32> to vector<8x32xf32>
    %233 = vector.extract_strided_slice %230 {offsets = [0, 32], sizes = [8, 32], strides = [1, 1]} : vector<8x128xf32> to vector<8x32xf32>
    %234 = vector.extract_strided_slice %231 {offsets = [0, 64], sizes = [8, 32], strides = [1, 1]} : vector<8x128xf32> to vector<8x32xf32>
    %235 = vector.extract_strided_slice %230 {offsets = [0, 96], sizes = [8, 32], strides = [1, 1]} : vector<8x128xf32> to vector<8x32xf32>
    %236 = arith.mulf %233, %197 : vector<8x32xf32>
    %237 = arith.mulf %232, %234 : vector<8x32xf32>
    %238 = arith.addf %236, %237 : vector<8x32xf32>
    %239 = math.tanh %238 : vector<8x32xf32>
    %240 = arith.mulf %235, %239 : vector<8x32xf32>
    %241 = tpu.concatenate %240, %217 in 1 : vector<8x32xf32>, vector<8x32xf32> -> vector<8x64xf32>
    %cst_43 = arith.constant dense<0.000000e+00> : vector<8x128xf32>
    %242 = tpu.matmul %241, %3, %cst_43 {dimension_numbers = #tpu.dot_dimension_numbers<[1], [0], [0], [1], [0, 0, 1, 1], [], []>} : vector<8x64xf32>, vector<64x128xf32>, vector<8x128xf32> -> vector<8x128xf32>
    %243 = arith.addf %242, %8 : vector<8x128xf32>
    %244 = arith.negf %243 : vector<8x128xf32>
    %245 = math.exp %244 : vector<8x128xf32>
    %cst_44 = arith.constant 1.000000e+00 : f32
    %246 = vector.broadcast %cst_44 : f32 to vector<8x128xf32>
    %247 = arith.addf %246, %245 : vector<8x128xf32>
    %248 = arith.divf %246, %247 : vector<8x128xf32>
    %249 = math.tanh %243 : vector<8x128xf32>
    %250 = vector.extract_strided_slice %248 {offsets = [0, 0], sizes = [8, 32], strides = [1, 1]} : vector<8x128xf32> to vector<8x32xf32>
    %251 = vector.extract_strided_slice %248 {offsets = [0, 32], sizes = [8, 32], strides = [1, 1]} : vector<8x128xf32> to vector<8x32xf32>
    %252 = vector.extract_strided_slice %249 {offsets = [0, 64], sizes = [8, 32], strides = [1, 1]} : vector<8x128xf32> to vector<8x32xf32>
    %253 = vector.extract_strided_slice %248 {offsets = [0, 96], sizes = [8, 32], strides = [1, 1]} : vector<8x128xf32> to vector<8x32xf32>
    %254 = arith.mulf %251, %215 : vector<8x32xf32>
    %255 = arith.mulf %250, %252 : vector<8x32xf32>
    %256 = arith.addf %254, %255 : vector<8x32xf32>
    %257 = math.tanh %256 : vector<8x32xf32>
    %258 = arith.mulf %253, %257 : vector<8x32xf32>
    %259 = arith.mulf %258, %10 : vector<8x32xf32>
    %cst_45 = arith.constant dense<0.000000e+00> : vector<8xf32>
    %260 = vector.multi_reduction <add>, %259, %cst_45 [1] : vector<8x32xf32> to vector<8xf32>
    %261 = vector.shape_cast %260 : vector<8xf32> to vector<8x1xf32>
    %262 = arith.addf %261, %12 : vector<8x1xf32>
    %c0_46 = arith.constant 0 : index
    %c5 = arith.constant 5 : index
    %263 = vector.load %arg3[%c0_46, %c5] : memref<8x8xf32, #tpu.memory_space<vmem>>, vector<8x1xf32>
    tpu.vector_store %arg3[%c0_46, %c5], %262 {strides = array<i32>} : memref<8x8xf32, #tpu.memory_space<vmem>>, vector<8x1xf32>,
    %264 = vector.extract_strided_slice %16 {offsets = [48, 0], sizes = [8, 128], strides = [1, 1]} : vector<64x128xf32> to vector<8x128xf32>
    %cst_47 = arith.constant dense<0.000000e+00> : vector<8x128xf32>
    %265 = tpu.matmul %240, %1, %cst_47 {dimension_numbers = #tpu.dot_dimension_numbers<[1], [0], [0], [1], [0, 0, 1, 1], [], []>} : vector<8x32xf32>, vector<32x128xf32>, vector<8x128xf32> -> vector<8x128xf32>
    %266 = arith.addf %264, %265 : vector<8x128xf32>
    %267 = arith.negf %266 : vector<8x128xf32>
    %268 = math.exp %267 : vector<8x128xf32>
    %cst_48 = arith.constant 1.000000e+00 : f32
    %269 = vector.broadcast %cst_48 : f32 to vector<8x128xf32>
    %270 = arith.addf %269, %268 : vector<8x128xf32>
    %271 = arith.divf %269, %270 : vector<8x128xf32>
    %272 = math.tanh %266 : vector<8x128xf32>
    %273 = vector.extract_strided_slice %271 {offsets = [0, 0], sizes = [8, 32], strides = [1, 1]} : vector<8x128xf32> to vector<8x32xf32>
    %274 = vector.extract_strided_slice %271 {offsets = [0, 32], sizes = [8, 32], strides = [1, 1]} : vector<8x128xf32> to vector<8x32xf32>
    %275 = vector.extract_strided_slice %272 {offsets = [0, 64], sizes = [8, 32], strides = [1, 1]} : vector<8x128xf32> to vector<8x32xf32>
    %276 = vector.extract_strided_slice %271 {offsets = [0, 96], sizes = [8, 32], strides = [1, 1]} : vector<8x128xf32> to vector<8x32xf32>
    %277 = arith.mulf %274, %238 : vector<8x32xf32>
    %278 = arith.mulf %273, %275 : vector<8x32xf32>
    %279 = arith.addf %277, %278 : vector<8x32xf32>
    %280 = math.tanh %279 : vector<8x32xf32>
    %281 = arith.mulf %276, %280 : vector<8x32xf32>
    %282 = tpu.concatenate %281, %258 in 1 : vector<8x32xf32>, vector<8x32xf32> -> vector<8x64xf32>
    %cst_49 = arith.constant dense<0.000000e+00> : vector<8x128xf32>
    %283 = tpu.matmul %282, %3, %cst_49 {dimension_numbers = #tpu.dot_dimension_numbers<[1], [0], [0], [1], [0, 0, 1, 1], [], []>} : vector<8x64xf32>, vector<64x128xf32>, vector<8x128xf32> -> vector<8x128xf32>
    %284 = arith.addf %283, %8 : vector<8x128xf32>
    %285 = arith.negf %284 : vector<8x128xf32>
    %286 = math.exp %285 : vector<8x128xf32>
    %cst_50 = arith.constant 1.000000e+00 : f32
    %287 = vector.broadcast %cst_50 : f32 to vector<8x128xf32>
    %288 = arith.addf %287, %286 : vector<8x128xf32>
    %289 = arith.divf %287, %288 : vector<8x128xf32>
    %290 = math.tanh %284 : vector<8x128xf32>
    %291 = vector.extract_strided_slice %289 {offsets = [0, 0], sizes = [8, 32], strides = [1, 1]} : vector<8x128xf32> to vector<8x32xf32>
    %292 = vector.extract_strided_slice %289 {offsets = [0, 32], sizes = [8, 32], strides = [1, 1]} : vector<8x128xf32> to vector<8x32xf32>
    %293 = vector.extract_strided_slice %290 {offsets = [0, 64], sizes = [8, 32], strides = [1, 1]} : vector<8x128xf32> to vector<8x32xf32>
    %294 = vector.extract_strided_slice %289 {offsets = [0, 96], sizes = [8, 32], strides = [1, 1]} : vector<8x128xf32> to vector<8x32xf32>
    %295 = arith.mulf %292, %256 : vector<8x32xf32>
    %296 = arith.mulf %291, %293 : vector<8x32xf32>
    %297 = arith.addf %295, %296 : vector<8x32xf32>
    %298 = math.tanh %297 : vector<8x32xf32>
    %299 = arith.mulf %294, %298 : vector<8x32xf32>
    %300 = arith.mulf %299, %10 : vector<8x32xf32>
    %cst_51 = arith.constant dense<0.000000e+00> : vector<8xf32>
    %301 = vector.multi_reduction <add>, %300, %cst_51 [1] : vector<8x32xf32> to vector<8xf32>
    %302 = vector.shape_cast %301 : vector<8xf32> to vector<8x1xf32>
    %303 = arith.addf %302, %12 : vector<8x1xf32>
    %c0_52 = arith.constant 0 : index
    %c6 = arith.constant 6 : index
    %304 = vector.load %arg3[%c0_52, %c6] : memref<8x8xf32, #tpu.memory_space<vmem>>, vector<8x1xf32>
    tpu.vector_store %arg3[%c0_52, %c6], %303 {strides = array<i32>} : memref<8x8xf32, #tpu.memory_space<vmem>>, vector<8x1xf32>,
    %305 = vector.extract_strided_slice %16 {offsets = [56, 0], sizes = [8, 128], strides = [1, 1]} : vector<64x128xf32> to vector<8x128xf32>
    %cst_53 = arith.constant dense<0.000000e+00> : vector<8x128xf32>
    %306 = tpu.matmul %281, %1, %cst_53 {dimension_numbers = #tpu.dot_dimension_numbers<[1], [0], [0], [1], [0, 0, 1, 1], [], []>} : vector<8x32xf32>, vector<32x128xf32>, vector<8x128xf32> -> vector<8x128xf32>
    %307 = arith.addf %305, %306 : vector<8x128xf32>
    %308 = arith.negf %307 : vector<8x128xf32>
    %309 = math.exp %308 : vector<8x128xf32>
    %cst_54 = arith.constant 1.000000e+00 : f32
    %310 = vector.broadcast %cst_54 : f32 to vector<8x128xf32>
    %311 = arith.addf %310, %309 : vector<8x128xf32>
    %312 = arith.divf %310, %311 : vector<8x128xf32>
    %313 = math.tanh %307 : vector<8x128xf32>
    %314 = vector.extract_strided_slice %312 {offsets = [0, 0], sizes = [8, 32], strides = [1, 1]} : vector<8x128xf32> to vector<8x32xf32>
    %315 = vector.extract_strided_slice %312 {offsets = [0, 32], sizes = [8, 32], strides = [1, 1]} : vector<8x128xf32> to vector<8x32xf32>
    %316 = vector.extract_strided_slice %313 {offsets = [0, 64], sizes = [8, 32], strides = [1, 1]} : vector<8x128xf32> to vector<8x32xf32>
    %317 = vector.extract_strided_slice %312 {offsets = [0, 96], sizes = [8, 32], strides = [1, 1]} : vector<8x128xf32> to vector<8x32xf32>
    %318 = arith.mulf %315, %279 : vector<8x32xf32>
    %319 = arith.mulf %314, %316 : vector<8x32xf32>
    %320 = arith.addf %318, %319 : vector<8x32xf32>
    %321 = math.tanh %320 : vector<8x32xf32>
    %322 = arith.mulf %317, %321 : vector<8x32xf32>
    %323 = tpu.concatenate %322, %299 in 1 : vector<8x32xf32>, vector<8x32xf32> -> vector<8x64xf32>
    %cst_55 = arith.constant dense<0.000000e+00> : vector<8x128xf32>
    %324 = tpu.matmul %323, %3, %cst_55 {dimension_numbers = #tpu.dot_dimension_numbers<[1], [0], [0], [1], [0, 0, 1, 1], [], []>} : vector<8x64xf32>, vector<64x128xf32>, vector<8x128xf32> -> vector<8x128xf32>
    %325 = arith.addf %324, %8 : vector<8x128xf32>
    %326 = arith.negf %325 : vector<8x128xf32>
    %327 = math.exp %326 : vector<8x128xf32>
    %cst_56 = arith.constant 1.000000e+00 : f32
    %328 = vector.broadcast %cst_56 : f32 to vector<8x128xf32>
    %329 = arith.addf %328, %327 : vector<8x128xf32>
    %330 = arith.divf %328, %329 : vector<8x128xf32>
    %331 = math.tanh %325 : vector<8x128xf32>
    %332 = vector.extract_strided_slice %330 {offsets = [0, 0], sizes = [8, 32], strides = [1, 1]} : vector<8x128xf32> to vector<8x32xf32>
    %333 = vector.extract_strided_slice %330 {offsets = [0, 32], sizes = [8, 32], strides = [1, 1]} : vector<8x128xf32> to vector<8x32xf32>
    %334 = vector.extract_strided_slice %331 {offsets = [0, 64], sizes = [8, 32], strides = [1, 1]} : vector<8x128xf32> to vector<8x32xf32>
    %335 = vector.extract_strided_slice %330 {offsets = [0, 96], sizes = [8, 32], strides = [1, 1]} : vector<8x128xf32> to vector<8x32xf32>
    %336 = arith.mulf %333, %297 : vector<8x32xf32>
    %337 = arith.mulf %332, %334 : vector<8x32xf32>
    %338 = arith.addf %336, %337 : vector<8x32xf32>
    %339 = math.tanh %338 : vector<8x32xf32>
    %340 = arith.mulf %335, %339 : vector<8x32xf32>
    %341 = arith.mulf %340, %10 : vector<8x32xf32>
    %cst_57 = arith.constant dense<0.000000e+00> : vector<8xf32>
    %342 = vector.multi_reduction <add>, %341, %cst_57 [1] : vector<8x32xf32> to vector<8xf32>
    %343 = vector.shape_cast %342 : vector<8xf32> to vector<8x1xf32>
    %344 = arith.addf %343, %12 : vector<8x1xf32>
    %c0_58 = arith.constant 0 : index
    %c7 = arith.constant 7 : index
    %345 = vector.load %arg3[%c0_58, %c7] : memref<8x8xf32, #tpu.memory_space<vmem>>, vector<8x1xf32>
    tpu.vector_store %arg3[%c0_58, %c7], %344 {strides = array<i32>} : memref<8x8xf32, #tpu.memory_space<vmem>>, vector<8x1xf32>,
    return
  }
  func.func @transform_0(%arg0: i32) -> (i32, i32) {
    %c0_i32 = arith.constant 0 : i32
    %c0_i32_0 = arith.constant 0 : i32
    %c0_i32_1 = arith.constant 0 : i32
    return %c0_i32, %c0_i32_0 : i32, i32
  }
  func.func @transform_1(%arg0: i32) -> (i32, i32) {
    %c0_i32 = arith.constant 0 : i32
    %c0_i32_0 = arith.constant 0 : i32
    %c0_i32_1 = arith.constant 0 : i32
    return %c0_i32, %c0_i32_0 : i32, i32
  }
  func.func @transform_2(%arg0: i32) -> (i32, i32) {
    %c0_i32 = arith.constant 0 : i32
    %c0_i32_0 = arith.constant 0 : i32
    %c0_i32_1 = arith.constant 0 : i32
    return %c0_i32, %c0_i32_0 : i32, i32
  }
}

</mosaic_0001>

<llo_original>
// kernel: tpu_custom_call.1
$region0: #{tpu_custom_call.1}
  #allocation0 [shape = 'u32[]', space=smem, size = 0x4, offset = 0x4, fixed_abs, tag = 'smem constant byte address 0x4 - core index']
  #allocation1 [shape = 'u32[144,128]{1,0:T(1,128)}', space=vmem, size = 0x12000, scoped, tag = 'internal scratch']
  %s0 = inlined_call_operand.vmem [shape: f32[64,8], index: 0, kind: input, shape index: {}]
  %s1 = inlined_call_operand.hbm [shape: f32[128,128], index: 1, kind: input, shape index: {}]
  %s2 = inlined_call_operand.hbm [shape: f32[8,8], index: 2, kind: output, shape index: {}]
  %s3 = sld [smem:[#allocation0]]
  $region22: #{tpu_custom_call.1} parent=0
    _
  %s5 = ssub.s32 1, %s3
  %s6 = scalar_select 0, %s5, %s3
  $region1: #{tpu_custom_call.1} parent=0
    #allocation2 [shape = 'u8[65536]{0}', space=vmem, size = 0x10000, scoped, tag = 'input window, operand 1, single buffered']
    #allocation3 [shape = 's32[1]{0}', space=sflag, size = 0x4, scoped, tag = 'scoped memory for tpu_custom_call.1']
    #allocation4 [shape = 's32[1]{0}', space=sflag, size = 0x4, scoped, tag = 'scoped memory for tpu_custom_call.1']
    #allocation5 [shape = 'u8[4096]{0}', space=vmem, size = 0x1000, scoped, tag = 'output window, operand 0, single buffered']
    %7 = vsyncpa [#allocation3], 0
    %8 = vsyncpa [#allocation4], 0
    // Predicated region
    $region2: #{tpu_custom_call.1} parent=1 // pred_check
      _
    $region3: #{tpu_custom_call.1} parent=1 // pred_check_branch
      %10 = sbr.rel (0) target = $region5
    $region4: #{tpu_custom_call.1} parent=1 // pred_region
      _
    $region5: #{tpu_custom_call.1} parent=1 // pred_fallthru
      _
    // Predicated region
    $region6: #{tpu_custom_call.1} parent=1 // pred_check
      _
    $region7: #{tpu_custom_call.1} parent=1 // pred_check_branch
      %12 = sbr.rel (0) target = $region9
    $region8: #{tpu_custom_call.1} parent=1 // pred_region
      %s14 = ssub.s32 2048, 2048
      %15 = vsyncadd [#allocation3], %s14
      %s16 = sshll.u32 [#allocation2], 4
      %s17 = int_to_ptr.vmem [resolvable:$true] %s16
      %22 = dma.hbm_to_vmem [thread:$0]  %s1, 2048, %s17, [#allocation3], 128, 128, 8
    $region9: #{tpu_custom_call.1} parent=1 // pred_fallthru
      _
    // Predicated region
    $region10: #{tpu_custom_call.1} parent=1 // pred_check
      _
    $region11: #{tpu_custom_call.1} parent=1 // pred_check_branch
      %24 = sbr.rel (0) target = $region13
    $region12: #{tpu_custom_call.1} parent=1 // pred_region
      %25 = dma.done [#allocation3], 2048
    $region13: #{tpu_custom_call.1} parent=1 // pred_fallthru
      _
    %v26 = vld [vmem:[#allocation2] sm:$0xff]
    %v27 = vld [vmem:[#allocation2 + $0x8] sm:$0xff]
    %v28 = vld [vmem:[#allocation2 + $0x10] sm:$0xff]
    %v29 = vld [vmem:[#allocation2 + $0x18] sm:$0xff]
    %v30 = vld [vmem:[#allocation2 + $0x20] sm:$0xff]
    %v31 = vld [vmem:[#allocation2 + $0x28] sm:$0x1]
    %v32 = vld [vmem:[#allocation2 + $0x30] sm:$0xff]
    %v33 = vld [vmem:[#allocation2 + $0x38] sm:$0xff]
    %v34 = vld [vmem:[#allocation2 + $0x40] sm:$0xff]
    %v35 = vld [vmem:[#allocation2 + $0x48] sm:$0xff]
    %v36 = vld [vmem:[#allocation2 + $0x50] sm:$0xff]
    %v37 = vld [vmem:[#allocation2 + $0x58] sm:$0xff]
    %v38 = vld [vmem:[#allocation2 + $0x60] sm:$0xff]
    %v39 = vld [vmem:[#allocation2 + $0x68] sm:$0xff]
    %v40 = vld [vmem:[#allocation2 + $0x70] sm:$0x1]
    %v41 = vld [vmem:[#allocation2 + $0x78] sm:$0x1]
    %v42 = vlaneseq
    %v43 = vshrl.u32 %v42, 7
    %v44 = vsub.s32 0, %v43
    %v45 = vrot.slane %v40, %v44
    %v46 = vlaneseq
    %v47 = vshrl.u32 %v46, 7
    %v48 = vsub.s32 0, %v47
    %v49 = vrot.slane %v41, %v48
    %v50 = vld [vmem:[%s0] sm:$0xff]
    %v51 = vld [vmem:[%s0 + $0x8] sm:$0xff]
    %v52 = vld [vmem:[%s0 + $0x10] sm:$0xff]
    %v53 = vld [vmem:[%s0 + $0x18] sm:$0xff]
    %v54 = vld [vmem:[%s0 + $0x20] sm:$0xff]
    %v55 = vld [vmem:[%s0 + $0x28] sm:$0xff]
    %v56 = vld [vmem:[%s0 + $0x30] sm:$0xff]
    %v57 = vld [vmem:[%s0 + $0x38] sm:$0xff]
    %v58 = vlaneseq
    %v59 = vshrl.u32 %v58, 7
    %v60 = vsub.s32 0, %v59
    %v61 = vrot.slane %v31, %v60
    %vm62 = vcmask 64512
    %v64 = vsel %vm62, %v50, 0
    %v67 = vsel %vm62, %v51, 0
    %v70 = vsel %vm62, %v52, 0
    %v73 = vsel %vm62, %v53, 0
    %v76 = vsel %vm62, %v54, 0
    %v79 = vsel %vm62, %v55, 0
    %v82 = vsel %vm62, %v56, 0
    %v85 = vsel %vm62, %v57, 0
    %87 = vmatprep.subr.mxu0 0.0
    %88 = vmatpush1.msra.mxu0 %v26
    %89 = vmatprep.subr.mxu0 0.0
    %90 = vmatpush1.msra.mxu0 0.0
    %91 = vmatprep.subr.mxu0 0.0
    %92 = vmatpush1.msra.mxu0 0.0
    %93 = vmatprep.subr.mxu0 0.0
    %94 = vmatpush1.msra.mxu0 0.0
    %95 = vmatprep.subr.mxu0 0.0
    %96 = vmatpush1.msra.mxu0 0.0
    %97 = vmatprep.subr.mxu0 0.0
    %98 = vmatpush1.msra.mxu0 0.0
    %99 = vmatprep.subr.mxu0 0.0
    %100 = vmatpush1.msra.mxu0 0.0
    %101 = vmatprep.subr.mxu0 0.0
    %102 = vmatpush1.msra.mxu0 0.0
    %103 = vmatprep.subr.mxu0 0.0
    %104 = vmatpush1.msra.mxu0 0.0
    %105 = vmatprep.subr.mxu0 0.0
    %106 = vmatpush1.msra.mxu0 0.0
    %107 = vmatprep.subr.mxu0 0.0
    %108 = vmatpush1.msra.mxu0 0.0
    %109 = vmatprep.subr.mxu0 0.0
    %110 = vmatpush1.msra.mxu0 0.0
    %111 = vmatprep.subr.mxu0 0.0
    %112 = vmatpush1.msra.mxu0 0.0
    %113 = vmatprep.subr.mxu0 0.0
    %114 = vmatpush1.msra.mxu0 0.0
    %115 = vmatprep.subr.mxu0 0.0
    %116 = vmatpush1.msra.mxu0 0.0
    %117 = vmatprep.subr.mxu0 0.0
    %118 = vmatpush1.msra.mxu0 0.0
    %119 = vmatprep.subr.mxu0 0.0
    %120 = vmatpush1.msra.mxu0 0.0
    %121 = vmatprep.subr.mxu0 0.0
    %122 = vmatpush1.msra.mxu0 0.0
    %123 = vmatprep.subr.mxu0 0.0
    %124 = vmatpush1.msra.mxu0 0.0
    %125 = vmatprep.subr.mxu0 0.0
    %126 = vmatpush1.msra.mxu0 0.0
    %127 = vmatprep.subr.mxu0 0.0
    %128 = vmatpush1.msra.mxu0 0.0
    %129 = vmatprep.subr.mxu0 0.0
    %130 = vmatpush1.msra.mxu0 0.0
    %131 = vmatprep.subr.mxu0 0.0
    %132 = vmatpush1.msra.mxu0 0.0
    %133 = vmatprep.subr.mxu0 0.0
    %134 = vmatpush1.msra.mxu0 0.0
    %135 = vmatprep.subr.mxu0 0.0
    %136 = vmatpush1.msra.mxu0 0.0
    %137 = vmatprep.subr.mxu0 0.0
    %138 = vmatpush1.msra.mxu0 0.0
    %139 = vmatprep.subr.mxu0 0.0
    %140 = vmatpush1.msra.mxu0 0.0
    %141 = vmatprep.subr.mxu0 0.0
    %142 = vmatpush1.msra.mxu0 0.0
    %143 = vmatprep.subr.mxu0 0.0
    %144 = vmatpush1.msra.mxu0 0.0
    %145 = vmatprep.subr.mxu0 0.0
    %146 = vmatpush1.msra.mxu0 0.0
    %147 = vmatprep.subr.mxu0 0.0
    %148 = vmatpush1.msra.mxu0 0.0
    %149 = vmatprep.subr.mxu0 0.0
    %150 = vmatpush1.msra.mxu0 0.0
    %151 = vmatprep.mubr.f32.mxu0 0.0
    %152 = vmatmul.mubr.f32.gmra.mrb[0].mxu0 %v64
    %v153 = vpop.f32.mrb[0].mxu0
    %v154 = vadd.f32 %v61, %v153
    %v155 = vpop.f32.mrb[0].mxu0
    %156 = vmatprep.mubr.f32.mxu0 0.0
    %157 = vmatmul.mubr.f32.gmra.mrb[0].mxu0 %v67
    %v158 = vpop.f32.mrb[0].mxu0
    %v159 = vadd.f32 %v61, %v158
    %v160 = vpop.f32.mrb[0].mxu0
    %161 = vmatprep.mubr.f32.mxu0 0.0
    %162 = vmatmul.mubr.f32.gmra.mrb[0].mxu0 %v70
    %v163 = vpop.f32.mrb[0].mxu0
    %v164 = vadd.f32 %v61, %v163
    %v165 = vpop.f32.mrb[0].mxu0
    %166 = vmatprep.mubr.f32.mxu0 0.0
    %167 = vmatmul.mubr.f32.gmra.mrb[0].mxu0 %v73
    %v168 = vpop.f32.mrb[0].mxu0
    %v169 = vadd.f32 %v61, %v168
    %v170 = vpop.f32.mrb[0].mxu0
    %171 = vmatprep.mubr.f32.mxu0 0.0
    %172 = vmatmul.mubr.f32.gmra.mrb[0].mxu0 %v76
    %v173 = vpop.f32.mrb[0].mxu0
    %v174 = vadd.f32 %v61, %v173
    %v175 = vpop.f32.mrb[0].mxu0
    %176 = vmatprep.mubr.f32.mxu0 0.0
    %177 = vmatmul.mubr.f32.gmra.mrb[0].mxu0 %v79
    %v178 = vpop.f32.mrb[0].mxu0
    %v179 = vadd.f32 %v61, %v178
    %v180 = vpop.f32.mrb[0].mxu0
    %181 = vmatprep.mubr.f32.mxu0 0.0
    %182 = vmatmul.mubr.f32.gmra.mrb[0].mxu0 %v82
    %v183 = vpop.f32.mrb[0].mxu0
    %v184 = vadd.f32 %v61, %v183
    %v185 = vpop.f32.mrb[0].mxu0
    %186 = vmatprep.mubr.f32.mxu0 0.0
    %187 = vmatmul.mubr.f32.gmra.mrb[0].mxu0 %v85
    %v188 = vpop.f32.mrb[0].mxu0
    %v189 = vadd.f32 %v61, %v188
    %v190 = vpop.f32.mrb[0].mxu0
    %191 = vdwg.mxu0
    %vm192 = vcmask 261120
    %v194 = vsel %vm192, 0.0, 0
    %196 = vmatprep.subr.mxu0 0.0
    %197 = vmatpush1.msra.mxu0 %v27
    %198 = vmatprep.subr.mxu0 0.0
    %199 = vmatpush1.msra.mxu0 %v28
    %200 = vmatprep.subr.mxu0 0.0
    %201 = vmatpush1.msra.mxu0 %v29
    %202 = vmatprep.subr.mxu0 0.0
    %203 = vmatpush1.msra.mxu0 %v30
    %204 = vmatprep.subr.mxu0 0.0
    %205 = vmatpush1.msra.mxu0 0.0
    %206 = vmatprep.subr.mxu0 0.0
    %207 = vmatpush1.msra.mxu0 0.0
    %208 = vmatprep.subr.mxu0 0.0
    %209 = vmatpush1.msra.mxu0 0.0
    %210 = vmatprep.subr.mxu0 0.0
    %211 = vmatpush1.msra.mxu0 0.0
    %212 = vmatprep.subr.mxu0 0.0
    %213 = vmatpush1.msra.mxu0 0.0
    %214 = vmatprep.subr.mxu0 0.0
    %215 = vmatpush1.msra.mxu0 0.0
    %216 = vmatprep.subr.mxu0 0.0
    %217 = vmatpush1.msra.mxu0 0.0
    %218 = vmatprep.subr.mxu0 0.0
    %219 = vmatpush1.msra.mxu0 0.0
    %220 = vmatprep.subr.mxu0 0.0
    %221 = vmatpush1.msra.mxu0 0.0
    %222 = vmatprep.subr.mxu0 0.0
    %223 = vmatpush1.msra.mxu0 0.0
    %224 = vmatprep.subr.mxu0 0.0
    %225 = vmatpush1.msra.mxu0 0.0
    %226 = vmatprep.subr.mxu0 0.0
    %227 = vmatpush1.msra.mxu0 0.0
    %228 = vmatprep.subr.mxu0 0.0
    %229 = vmatpush1.msra.mxu0 0.0
    %230 = vmatprep.subr.mxu0 0.0
    %231 = vmatpush1.msra.mxu0 0.0
    %232 = vmatprep.subr.mxu0 0.0
    %233 = vmatpush1.msra.mxu0 0.0
    %234 = vmatprep.subr.mxu0 0.0
    %235 = vmatpush1.msra.mxu0 0.0
    %236 = vmatprep.subr.mxu0 0.0
    %237 = vmatpush1.msra.mxu0 0.0
    %238 = vmatprep.subr.mxu0 0.0
    %239 = vmatpush1.msra.mxu0 0.0
    %240 = vmatprep.subr.mxu0 0.0
    %241 = vmatpush1.msra.mxu0 0.0
    %242 = vmatprep.subr.mxu0 0.0
    %243 = vmatpush1.msra.mxu0 0.0
    %244 = vmatprep.subr.mxu0 0.0
    %245 = vmatpush1.msra.mxu0 0.0
    %246 = vmatprep.subr.mxu0 0.0
    %247 = vmatpush1.msra.mxu0 0.0
    %248 = vmatprep.subr.mxu0 0.0
    %249 = vmatpush1.msra.mxu0 0.0
    %250 = vmatprep.subr.mxu0 0.0
    %251 = vmatpush1.msra.mxu0 0.0
    %252 = vmatprep.subr.mxu0 0.0
    %253 = vmatpush1.msra.mxu0 0.0
    %254 = vmatprep.subr.mxu0 0.0
    %255 = vmatpush1.msra.mxu0 0.0
    %256 = vmatprep.subr.mxu0 0.0
    %257 = vmatpush1.msra.mxu0 0.0
    %258 = vmatprep.subr.mxu0 0.0
    %259 = vmatpush1.msra.mxu0 0.0
    %260 = vmatprep.mubr.f32.mxu0 0.0
    %261 = vmatmul.mubr.f32.gmra.mrb[0].mxu0 %v194
    %v262 = vpop.f32.mrb[0].mxu0
    %v263 = vadd.f32 0.0, %v262
    %v264 = vpop.f32.mrb[0].mxu0
    %265 = vdwg.mxu0
    %v266 = vadd.f32 %v154, %v263
    %v267 = vxor.u32 %v266, 2147483648
    %v268 = vmul.f32 %v267, 1.442695
    %v269 = vpow.pop %v268
    %v270 = vadd.f32 %v269, 1.0
    %v271 = vrcp.pop %v270
    %v272 = vmul.f32 1.0, %v271
    %v273 = vtanh.pop %v266
    %v274 = vmul.f32 %v272, 0.0
    %276 = vrot.lane.b32.xlu0 %v273, 64
    %v277 = vpop.permute.xlu0 %276
    %v279 = vmul.f32 %v272, %v277
    %281 = vrot.lane.b32.xlu0 %v279, 32
    %v282 = vpop.permute.xlu0 %281
    %v284 = vadd.f32 %v274, %v282
    %v285 = vtanh.pop %v284
    %287 = vrot.lane.b32.xlu0 %v285, 64
    %v288 = vpop.permute.xlu0 %287
    %v290 = vmul.f32 %v272, %v288
    %292 = vrot.lane.b32.xlu0 %v290, 32
    %v293 = vpop.permute.xlu0 %292
    %v295 = vsel %vm192, %v293, 0.0
    %vm296 = vcmask 523264
    %v298 = vsel %vm296, %v295, 0
    %300 = vmatprep.subr.mxu0 0.0
    %301 = vmatpush1.msra.mxu0 %v32
    %302 = vmatprep.subr.mxu0 0.0
    %303 = vmatpush1.msra.mxu0 %v33
    %304 = vmatprep.subr.mxu0 0.0
    %305 = vmatpush1.msra.mxu0 %v34
    %306 = vmatprep.subr.mxu0 0.0
    %307 = vmatpush1.msra.mxu0 %v35
    %308 = vmatprep.subr.mxu0 0.0
    %309 = vmatpush1.msra.mxu0 %v36
    %310 = vmatprep.subr.mxu0 0.0
    %311 = vmatpush1.msra.mxu0 %v37
    %312 = vmatprep.subr.mxu0 0.0
    %313 = vmatpush1.msra.mxu0 %v38
    %314 = vmatprep.subr.mxu0 0.0
    %315 = vmatpush1.msra.mxu0 %v39
    %316 = vmatprep.subr.mxu0 0.0
    %317 = vmatpush1.msra.mxu0 0.0
    %318 = vmatprep.subr.mxu0 0.0
    %319 = vmatpush1.msra.mxu0 0.0
    %320 = vmatprep.subr.mxu0 0.0
    %321 = vmatpush1.msra.mxu0 0.0
    %322 = vmatprep.subr.mxu0 0.0
    %323 = vmatpush1.msra.mxu0 0.0
    %324 = vmatprep.subr.mxu0 0.0
    %325 = vmatpush1.msra.mxu0 0.0
    %326 = vmatprep.subr.mxu0 0.0
    %327 = vmatpush1.msra.mxu0 0.0
    %328 = vmatprep.subr.mxu0 0.0
    %329 = vmatpush1.msra.mxu0 0.0
    %330 = vmatprep.subr.mxu0 0.0
    %331 = vmatpush1.msra.mxu0 0.0
    %332 = vmatprep.subr.mxu0 0.0
    %333 = vmatpush1.msra.mxu0 0.0
    %334 = vmatprep.subr.mxu0 0.0
    %335 = vmatpush1.msra.mxu0 0.0
    %336 = vmatprep.subr.mxu0 0.0
    %337 = vmatpush1.msra.mxu0 0.0
    %338 = vmatprep.subr.mxu0 0.0
    %339 = vmatpush1.msra.mxu0 0.0
    %340 = vmatprep.subr.mxu0 0.0
    %341 = vmatpush1.msra.mxu0 0.0
    %342 = vmatprep.subr.mxu0 0.0
    %343 = vmatpush1.msra.mxu0 0.0
    %344 = vmatprep.subr.mxu0 0.0
    %345 = vmatpush1.msra.mxu0 0.0
    %346 = vmatprep.subr.mxu0 0.0
    %347 = vmatpush1.msra.mxu0 0.0
    %348 = vmatprep.subr.mxu0 0.0
    %349 = vmatpush1.msra.mxu0 0.0
    %350 = vmatprep.subr.mxu0 0.0
    %351 = vmatpush1.msra.mxu0 0.0
    %352 = vmatprep.subr.mxu0 0.0
    %353 = vmatpush1.msra.mxu0 0.0
    %354 = vmatprep.subr.mxu0 0.0
    %355 = vmatpush1.msra.mxu0 0.0
    %356 = vmatprep.subr.mxu0 0.0
    %357 = vmatpush1.msra.mxu0 0.0
    %358 = vmatprep.subr.mxu0 0.0
    %359 = vmatpush1.msra.mxu0 0.0
    %360 = vmatprep.subr.mxu0 0.0
    %361 = vmatpush1.msra.mxu0 0.0
    %362 = vmatprep.subr.mxu0 0.0
    %363 = vmatpush1.msra.mxu0 0.0
    %364 = vmatprep.mubr.f32.mxu0 0.0
    %365 = vmatmul.mubr.f32.gmra.mrb[0].mxu0 %v298
    %v366 = vpop.f32.mrb[0].mxu0
    %v367 = vadd.f32 %v45, %v366
    %v368 = vpop.f32.mrb[0].mxu0
    %369 = vdwg.mxu0
    %v370 = vxor.u32 %v367, 2147483648
    %v371 = vmul.f32 %v370, 1.442695
    %v372 = vpow.pop %v371
    %v373 = vadd.f32 %v372, 1.0
    %v374 = vrcp.pop %v373
    %v375 = vmul.f32 1.0, %v374
    %v376 = vtanh.pop %v367
    %v377 = vmul.f32 %v375, 0.0
    %379 = vrot.lane.b32.xlu0 %v376, 64
    %v380 = vpop.permute.xlu0 %379
    %v382 = vmul.f32 %v375, %v380
    %384 = vrot.lane.b32.xlu0 %v382, 32
    %v385 = vpop.permute.xlu0 %384
    %v387 = vadd.f32 %v377, %v385
    %v388 = vtanh.pop %v387
    %390 = vrot.lane.b32.xlu0 %v388, 64
    %v391 = vpop.permute.xlu0 %390
    %v393 = vmul.f32 %v375, %v391
    %395 = vrot.lane.b32.xlu0 %v49, 96
    %v396 = vpop.permute.xlu0 %395
    %v398 = vmul.f32 %v393, %v396
    %400 = vrot.lane.b32.xlu0 %v398, 32
    %v401 = vpop.permute.xlu0 %400
    %v403 = vsel %vm192, %v401, 0.0
    %404 = vadd.xlane.f32.xlu0 %v403
    %v405 = vpop.xlane.xlu0 %404
    %v406 = vadd.f32 %v405, %v49
    %408 = vrot.lane.b32.xlu0 %v406, 96
    %v409 = vpop.permute.xlu0 %408
    %vm411 = vcmask 7168
    %412 = vst.msk [vmem:[#allocation5] sm:$0xff] %vm411, %v409
    %v413 = vsel %vm192, %v293, 0
    %415 = vmatprep.subr.mxu0 0.0
    %416 = vmatpush1.msra.mxu0 %v27
    %417 = vmatprep.subr.mxu0 0.0
    %418 = vmatpush1.msra.mxu0 %v28
    %419 = vmatprep.subr.mxu0 0.0
    %420 = vmatpush1.msra.mxu0 %v29
    %421 = vmatprep.subr.mxu0 0.0
    %422 = vmatpush1.msra.mxu0 %v30
    %423 = vmatprep.subr.mxu0 0.0
    %424 = vmatpush1.msra.mxu0 0.0
    %425 = vmatprep.subr.mxu0 0.0
    %426 = vmatpush1.msra.mxu0 0.0
    %427 = vmatprep.subr.mxu0 0.0
    %428 = vmatpush1.msra.mxu0 0.0
    %429 = vmatprep.subr.mxu0 0.0
    %430 = vmatpush1.msra.mxu0 0.0
    %431 = vmatprep.subr.mxu0 0.0
    %432 = vmatpush1.msra.mxu0 0.0
    %433 = vmatprep.subr.mxu0 0.0
    %434 = vmatpush1.msra.mxu0 0.0
    %435 = vmatprep.subr.mxu0 0.0
    %436 = vmatpush1.msra.mxu0 0.0
    %437 = vmatprep.subr.mxu0 0.0
    %438 = vmatpush1.msra.mxu0 0.0
    %439 = vmatprep.subr.mxu0 0.0
    %440 = vmatpush1.msra.mxu0 0.0
    %441 = vmatprep.subr.mxu0 0.0
    %442 = vmatpush1.msra.mxu0 0.0
    %443 = vmatprep.subr.mxu0 0.0
    %444 = vmatpush1.msra.mxu0 0.0
    %445 = vmatprep.subr.mxu0 0.0
    %446 = vmatpush1.msra.mxu0 0.0
    %447 = vmatprep.subr.mxu0 0.0
    %448 = vmatpush1.msra.mxu0 0.0
    %449 = vmatprep.subr.mxu0 0.0
    %450 = vmatpush1.msra.mxu0 0.0
    %451 = vmatprep.subr.mxu0 0.0
    %452 = vmatpush1.msra.mxu0 0.0
    %453 = vmatprep.subr.mxu0 0.0
    %454 = vmatpush1.msra.mxu0 0.0
    %455 = vmatprep.subr.mxu0 0.0
    %456 = vmatpush1.msra.mxu0 0.0
    %457 = vmatprep.subr.mxu0 0.0
    %458 = vmatpush1.msra.mxu0 0.0
    %459 = vmatprep.subr.mxu0 0.0
    %460 = vmatpush1.msra.mxu0 0.0
    %461 = vmatprep.subr.mxu0 0.0
    %462 = vmatpush1.msra.mxu0 0.0
    %463 = vmatprep.subr.mxu0 0.0
    %464 = vmatpush1.msra.mxu0 0.0
    %465 = vmatprep.subr.mxu0 0.0
    %466 = vmatpush1.msra.mxu0 0.0
    %467 = vmatprep.subr.mxu0 0.0
    %468 = vmatpush1.msra.mxu0 0.0
    %469 = vmatprep.subr.mxu0 0.0
    %470 = vmatpush1.msra.mxu0 0.0
    %471 = vmatprep.subr.mxu0 0.0
    %472 = vmatpush1.msra.mxu0 0.0
    %473 = vmatprep.subr.mxu0 0.0
    %474 = vmatpush1.msra.mxu0 0.0
    %475 = vmatprep.subr.mxu0 0.0
    %476 = vmatpush1.msra.mxu0 0.0
    %477 = vmatprep.subr.mxu0 0.0
    %478 = vmatpush1.msra.mxu0 0.0
    %479 = vmatprep.mubr.f32.mxu0 0.0
    %480 = vmatmul.mubr.f32.gmra.mrb[0].mxu0 %v413
    %v481 = vpop.f32.mrb[0].mxu0
    %v482 = vadd.f32 0.0, %v481
    %v483 = vpop.f32.mrb[0].mxu0
    %484 = vdwg.mxu0
    %v485 = vadd.f32 %v159, %v482
    %v486 = vxor.u32 %v485, 2147483648
    %v487 = vmul.f32 %v486, 1.442695
    %v488 = vpow.pop %v487
    %v489 = vadd.f32 %v488, 1.0
    %v490 = vrcp.pop %v489
    %v491 = vmul.f32 1.0, %v490
    %v492 = vtanh.pop %v485
    %v493 = vmul.f32 %v491, %v284
    %495 = vrot.lane.b32.xlu0 %v492, 64
    %v496 = vpop.permute.xlu0 %495
    %v498 = vmul.f32 %v491, %v496
    %500 = vrot.lane.b32.xlu0 %v498, 32
    %v501 = vpop.permute.xlu0 %500
    %v503 = vadd.f32 %v493, %v501
    %v504 = vtanh.pop %v503
    %506 = vrot.lane.b32.xlu0 %v504, 64
    %v507 = vpop.permute.xlu0 %506
    %v509 = vmul.f32 %v491, %v507
    %511 = vrot.lane.b32.xlu0 %v509, 32
    %v512 = vpop.permute.xlu0 %511
    %515 = vrot.lane.b32.xlu0 %v393, 64
    %v516 = vpop.permute.xlu0 %515
    %v518 = vsel %vm192, %v512, %v516
    %v520 = vsel %vm296, %v518, 0
    %522 = vmatprep.subr.mxu0 0.0
    %523 = vmatpush1.msra.mxu0 %v32
    %524 = vmatprep.subr.mxu0 0.0
    %525 = vmatpush1.msra.mxu0 %v33
    %526 = vmatprep.subr.mxu0 0.0
    %527 = vmatpush1.msra.mxu0 %v34
    %528 = vmatprep.subr.mxu0 0.0
    %529 = vmatpush1.msra.mxu0 %v35
    %530 = vmatprep.subr.mxu0 0.0
    %531 = vmatpush1.msra.mxu0 %v36
    %532 = vmatprep.subr.mxu0 0.0
    %533 = vmatpush1.msra.mxu0 %v37
    %534 = vmatprep.subr.mxu0 0.0
    %535 = vmatpush1.msra.mxu0 %v38
    %536 = vmatprep.subr.mxu0 0.0
    %537 = vmatpush1.msra.mxu0 %v39
    %538 = vmatprep.subr.mxu0 0.0
    %539 = vmatpush1.msra.mxu0 0.0
    %540 = vmatprep.subr.mxu0 0.0
    %541 = vmatpush1.msra.mxu0 0.0
    %542 = vmatprep.subr.mxu0 0.0
    %543 = vmatpush1.msra.mxu0 0.0
    %544 = vmatprep.subr.mxu0 0.0
    %545 = vmatpush1.msra.mxu0 0.0
    %546 = vmatprep.subr.mxu0 0.0
    %547 = vmatpush1.msra.mxu0 0.0
    %548 = vmatprep.subr.mxu0 0.0
    %549 = vmatpush1.msra.mxu0 0.0
    %550 = vmatprep.subr.mxu0 0.0
    %551 = vmatpush1.msra.mxu0 0.0
    %552 = vmatprep.subr.mxu0 0.0
    %553 = vmatpush1.msra.mxu0 0.0
    %554 = vmatprep.subr.mxu0 0.0
    %555 = vmatpush1.msra.mxu0 0.0
    %556 = vmatprep.subr.mxu0 0.0
    %557 = vmatpush1.msra.mxu0 0.0
    %558 = vmatprep.subr.mxu0 0.0
    %559 = vmatpush1.msra.mxu0 0.0
    %560 = vmatprep.subr.mxu0 0.0
    %561 = vmatpush1.msra.mxu0 0.0
    %562 = vmatprep.subr.mxu0 0.0
    %563 = vmatpush1.msra.mxu0 0.0
    %564 = vmatprep.subr.mxu0 0.0
    %565 = vmatpush1.msra.mxu0 0.0
    %566 = vmatprep.subr.mxu0 0.0
    %567 = vmatpush1.msra.mxu0 0.0
    %568 = vmatprep.subr.mxu0 0.0
    %569 = vmatpush1.msra.mxu0 0.0
    %570 = vmatprep.subr.mxu0 0.0
    %571 = vmatpush1.msra.mxu0 0.0
    %572 = vmatprep.subr.mxu0 0.0
    %573 = vmatpush1.msra.mxu0 0.0
    %574 = vmatprep.subr.mxu0 0.0
    %575 = vmatpush1.msra.mxu0 0.0
    %576 = vmatprep.subr.mxu0 0.0
    %577 = vmatpush1.msra.mxu0 0.0
    %578 = vmatprep.subr.mxu0 0.0
    %579 = vmatpush1.msra.mxu0 0.0
    %580 = vmatprep.subr.mxu0 0.0
    %581 = vmatpush1.msra.mxu0 0.0
    %582 = vmatprep.subr.mxu0 0.0
    %583 = vmatpush1.msra.mxu0 0.0
    %584 = vmatprep.subr.mxu0 0.0
    %585 = vmatpush1.msra.mxu0 0.0
    %586 = vmatprep.mubr.f32.mxu0 0.0
    %587 = vmatmul.mubr.f32.gmra.mrb[0].mxu0 %v520
    %v588 = vpop.f32.mrb[0].mxu0
    %v589 = vadd.f32 %v45, %v588
    %v590 = vpop.f32.mrb[0].mxu0
    %591 = vdwg.mxu0
    %v592 = vxor.u32 %v589, 2147483648
    %v593 = vmul.f32 %v592, 1.442695
    %v594 = vpow.pop %v593
    %v595 = vadd.f32 %v594, 1.0
    %v596 = vrcp.pop %v595
    %v597 = vmul.f32 1.0, %v596
    %v598 = vtanh.pop %v589
    %v599 = vmul.f32 %v597, %v387
    %601 = vrot.lane.b32.xlu0 %v598, 64
    %v602 = vpop.permute.xlu0 %601
    %v604 = vmul.f32 %v597, %v602
    %606 = vrot.lane.b32.xlu0 %v604, 32
    %v607 = vpop.permute.xlu0 %606
    %v609 = vadd.f32 %v599, %v607
    %v610 = vtanh.pop %v609
    %612 = vrot.lane.b32.xlu0 %v610, 64
    %v613 = vpop.permute.xlu0 %612
    %v615 = vmul.f32 %v597, %v613
    %v616 = vmul.f32 %v615, %v396
    %618 = vrot.lane.b32.xlu0 %v616, 32
    %v619 = vpop.permute.xlu0 %618
    %v621 = vsel %vm192, %v619, 0.0
    %622 = vadd.xlane.f32.xlu0 %v621
    %v623 = vpop.xlane.xlu0 %622
    %v624 = vadd.f32 %v623, %v49
    %626 = vrot.lane.b32.xlu0 %v624, 97
    %v627 = vpop.permute.xlu0 %626
    %vm629 = vcmask 15368
    %630 = vst.msk [vmem:[#allocation5] sm:$0xff] %vm629, %v627
    %v631 = vsel %vm192, %v512, 0
    %633 = vmatprep.subr.mxu0 0.0
    %634 = vmatpush1.msra.mxu0 %v27
    %635 = vmatprep.subr.mxu0 0.0
    %636 = vmatpush1.msra.mxu0 %v28
    %637 = vmatprep.subr.mxu0 0.0
    %638 = vmatpush1.msra.mxu0 %v29
    %639 = vmatprep.subr.mxu0 0.0
    %640 = vmatpush1.msra.mxu0 %v30
    %641 = vmatprep.subr.mxu0 0.0
    %642 = vmatpush1.msra.mxu0 0.0
    %643 = vmatprep.subr.mxu0 0.0
    %644 = vmatpush1.msra.mxu0 0.0
    %645 = vmatprep.subr.mxu0 0.0
    %646 = vmatpush1.msra.mxu0 0.0
    %647 = vmatprep.subr.mxu0 0.0
    %648 = vmatpush1.msra.mxu0 0.0
    %649 = vmatprep.subr.mxu0 0.0
    %650 = vmatpush1.msra.mxu0 0.0
    %651 = vmatprep.subr.mxu0 0.0
    %652 = vmatpush1.msra.mxu0 0.0
    %653 = vmatprep.subr.mxu0 0.0
    %654 = vmatpush1.msra.mxu0 0.0
    %655 = vmatprep.subr.mxu0 0.0
    %656 = vmatpush1.msra.mxu0 0.0
    %657 = vmatprep.subr.mxu0 0.0
    %658 = vmatpush1.msra.mxu0 0.0
    %659 = vmatprep.subr.mxu0 0.0
    %660 = vmatpush1.msra.mxu0 0.0
    %661 = vmatprep.subr.mxu0 0.0
    %662 = vmatpush1.msra.mxu0 0.0
    %663 = vmatprep.subr.mxu0 0.0
    %664 = vmatpush1.msra.mxu0 0.0
    %665 = vmatprep.subr.mxu0 0.0
    %666 = vmatpush1.msra.mxu0 0.0
    %667 = vmatprep.subr.mxu0 0.0
    %668 = vmatpush1.msra.mxu0 0.0
    %669 = vmatprep.subr.mxu0 0.0
    %670 = vmatpush1.msra.mxu0 0.0
    %671 = vmatprep.subr.mxu0 0.0
    %672 = vmatpush1.msra.mxu0 0.0
    %673 = vmatprep.subr.mxu0 0.0
    %674 = vmatpush1.msra.mxu0 0.0
    %675 = vmatprep.subr.mxu0 0.0
    %676 = vmatpush1.msra.mxu0 0.0
    %677 = vmatprep.subr.mxu0 0.0
    %678 = vmatpush1.msra.mxu0 0.0
    %679 = vmatprep.subr.mxu0 0.0
    %680 = vmatpush1.msra.mxu0 0.0
    %681 = vmatprep.subr.mxu0 0.0
    %682 = vmatpush1.msra.mxu0 0.0
    %683 = vmatprep.subr.mxu0 0.0
    %684 = vmatpush1.msra.mxu0 0.0
    %685 = vmatprep.subr.mxu0 0.0
    %686 = vmatpush1.msra.mxu0 0.0
    %687 = vmatprep.subr.mxu0 0.0
    %688 = vmatpush1.msra.mxu0 0.0
    %689 = vmatprep.subr.mxu0 0.0
    %690 = vmatpush1.msra.mxu0 0.0
    %691 = vmatprep.subr.mxu0 0.0
    %692 = vmatpush1.msra.mxu0 0.0
    %693 = vmatprep.subr.mxu0 0.0
    %694 = vmatpush1.msra.mxu0 0.0
    %695 = vmatprep.subr.mxu0 0.0
    %696 = vmatpush1.msra.mxu0 0.0
    %697 = vmatprep.mubr.f32.mxu0 0.0
    %698 = vmatmul.mubr.f32.gmra.mrb[0].mxu0 %v631
    %v699 = vpop.f32.mrb[0].mxu0
    %v700 = vadd.f32 0.0, %v699
    %v701 = vpop.f32.mrb[0].mxu0
    %702 = vdwg.mxu0
    %v703 = vadd.f32 %v164, %v700
    %v704 = vxor.u32 %v703, 2147483648
    %v705 = vmul.f32 %v704, 1.442695
    %v706 = vpow.pop %v705
    %v707 = vadd.f32 %v706, 1.0
    %v708 = vrcp.pop %v707
    %v709 = vmul.f32 1.0, %v708
    %v710 = vtanh.pop %v703
    %v711 = vmul.f32 %v709, %v503
    %713 = vrot.lane.b32.xlu0 %v710, 64
    %v714 = vpop.permute.xlu0 %713
    %v716 = vmul.f32 %v709, %v714
    %718 = vrot.lane.b32.xlu0 %v716, 32
    %v719 = vpop.permute.xlu0 %718
    %v721 = vadd.f32 %v711, %v719
    %v722 = vtanh.pop %v721
    %724 = vrot.lane.b32.xlu0 %v722, 64
    %v725 = vpop.permute.xlu0 %724
    %v727 = vmul.f32 %v709, %v725
    %729 = vrot.lane.b32.xlu0 %v727, 32
    %v730 = vpop.permute.xlu0 %729
    %733 = vrot.lane.b32.xlu0 %v615, 64
    %v734 = vpop.permute.xlu0 %733
    %v736 = vsel %vm192, %v730, %v734
    %v738 = vsel %vm296, %v736, 0
    %740 = vmatprep.subr.mxu0 0.0
    %741 = vmatpush1.msra.mxu0 %v32
    %742 = vmatprep.subr.mxu0 0.0
    %743 = vmatpush1.msra.mxu0 %v33
    %744 = vmatprep.subr.mxu0 0.0
    %745 = vmatpush1.msra.mxu0 %v34
    %746 = vmatprep.subr.mxu0 0.0
    %747 = vmatpush1.msra.mxu0 %v35
    %748 = vmatprep.subr.mxu0 0.0
    %749 = vmatpush1.msra.mxu0 %v36
    %750 = vmatprep.subr.mxu0 0.0
    %751 = vmatpush1.msra.mxu0 %v37
    %752 = vmatprep.subr.mxu0 0.0
    %753 = vmatpush1.msra.mxu0 %v38
    %754 = vmatprep.subr.mxu0 0.0
    %755 = vmatpush1.msra.mxu0 %v39
    %756 = vmatprep.subr.mxu0 0.0
    %757 = vmatpush1.msra.mxu0 0.0
    %758 = vmatprep.subr.mxu0 0.0
    %759 = vmatpush1.msra.mxu0 0.0
    %760 = vmatprep.subr.mxu0 0.0
    %761 = vmatpush1.msra.mxu0 0.0
    %762 = vmatprep.subr.mxu0 0.0
    %763 = vmatpush1.msra.mxu0 0.0
    %764 = vmatprep.subr.mxu0 0.0
    %765 = vmatpush1.msra.mxu0 0.0
    %766 = vmatprep.subr.mxu0 0.0
    %767 = vmatpush1.msra.mxu0 0.0
    %768 = vmatprep.subr.mxu0 0.0
    %769 = vmatpush1.msra.mxu0 0.0
    %770 = vmatprep.subr.mxu0 0.0
    %771 = vmatpush1.msra.mxu0 0.0
    %772 = vmatprep.subr.mxu0 0.0
    %773 = vmatpush1.msra.mxu0 0.0
    %774 = vmatprep.subr.mxu0 0.0
    %775 = vmatpush1.msra.mxu0 0.0
    %776 = vmatprep.subr.mxu0 0.0
    %777 = vmatpush1.msra.mxu0 0.0
    %778 = vmatprep.subr.mxu0 0.0
    %779 = vmatpush1.msra.mxu0 0.0
    %780 = vmatprep.subr.mxu0 0.0
    %781 = vmatpush1.msra.mxu0 0.0
    %782 = vmatprep.subr.mxu0 0.0
    %783 = vmatpush1.msra.mxu0 0.0
    %784 = vmatprep.subr.mxu0 0.0
    %785 = vmatpush1.msra.mxu0 0.0
    %786 = vmatprep.subr.mxu0 0.0
    %787 = vmatpush1.msra.mxu0 0.0
    %788 = vmatprep.subr.mxu0 0.0
    %789 = vmatpush1.msra.mxu0 0.0
    %790 = vmatprep.subr.mxu0 0.0
    %791 = vmatpush1.msra.mxu0 0.0
    %792 = vmatprep.subr.mxu0 0.0
    %793 = vmatpush1.msra.mxu0 0.0
    %794 = vmatprep.subr.mxu0 0.0
    %795 = vmatpush1.msra.mxu0 0.0
    %796 = vmatprep.subr.mxu0 0.0
    %797 = vmatpush1.msra.mxu0 0.0
    %798 = vmatprep.subr.mxu0 0.0
    %799 = vmatpush1.msra.mxu0 0.0
    %800 = vmatprep.subr.mxu0 0.0
    %801 = vmatpush1.msra.mxu0 0.0
    %802 = vmatprep.subr.mxu0 0.0
    %803 = vmatpush1.msra.mxu0 0.0
    %804 = vmatprep.mubr.f32.mxu0 0.0
    %805 = vmatmul.mubr.f32.gmra.mrb[0].mxu0 %v738
    %v806 = vpop.f32.mrb[0].mxu0
    %v807 = vadd.f32 %v45, %v806
    %v808 = vpop.f32.mrb[0].mxu0
    %809 = vdwg.mxu0
    %v810 = vxor.u32 %v807, 2147483648
    %v811 = vmul.f32 %v810, 1.442695
    %v812 = vpow.pop %v811
    %v813 = vadd.f32 %v812, 1.0
    %v814 = vrcp.pop %v813
    %v815 = vmul.f32 1.0, %v814
    %v816 = vtanh.pop %v807
    %v817 = vmul.f32 %v815, %v609
    %819 = vrot.lane.b32.xlu0 %v816, 64
    %v820 = vpop.permute.xlu0 %819
    %v822 = vmul.f32 %v815, %v820
    %824 = vrot.lane.b32.xlu0 %v822, 32
    %v825 = vpop.permute.xlu0 %824
    %v827 = vadd.f32 %v817, %v825
    %v828 = vtanh.pop %v827
    %830 = vrot.lane.b32.xlu0 %v828, 64
    %v831 = vpop.permute.xlu0 %830
    %v833 = vmul.f32 %v815, %v831
    %v834 = vmul.f32 %v833, %v396
    %836 = vrot.lane.b32.xlu0 %v834, 32
    %v837 = vpop.permute.xlu0 %836
    %v839 = vsel %vm192, %v837, 0.0
    %840 = vadd.xlane.f32.xlu0 %v839
    %v841 = vpop.xlane.xlu0 %840
    %v842 = vadd.f32 %v841, %v49
    %844 = vrot.lane.b32.xlu0 %v842, 98
    %v845 = vpop.permute.xlu0 %844
    %vm847 = vcmask 23568
    %848 = vst.msk [vmem:[#allocation5] sm:$0xff] %vm847, %v845
    %v849 = vsel %vm192, %v730, 0
    %851 = vmatprep.subr.mxu0 0.0
    %852 = vmatpush1.msra.mxu0 %v27
    %853 = vmatprep.subr.mxu0 0.0
    %854 = vmatpush1.msra.mxu0 %v28
    %855 = vmatprep.subr.mxu0 0.0
    %856 = vmatpush1.msra.mxu0 %v29
    %857 = vmatprep.subr.mxu0 0.0
    %858 = vmatpush1.msra.mxu0 %v30
    %859 = vmatprep.subr.mxu0 0.0
    %860 = vmatpush1.msra.mxu0 0.0
    %861 = vmatprep.subr.mxu0 0.0
    %862 = vmatpush1.msra.mxu0 0.0
    %863 = vmatprep.subr.mxu0 0.0
    %864 = vmatpush1.msra.mxu0 0.0
    %865 = vmatprep.subr.mxu0 0.0
    %866 = vmatpush1.msra.mxu0 0.0
    %867 = vmatprep.subr.mxu0 0.0
    %868 = vmatpush1.msra.mxu0 0.0
    %869 = vmatprep.subr.mxu0 0.0
    %870 = vmatpush1.msra.mxu0 0.0
    %871 = vmatprep.subr.mxu0 0.0
    %872 = vmatpush1.msra.mxu0 0.0
    %873 = vmatprep.subr.mxu0 0.0
    %874 = vmatpush1.msra.mxu0 0.0
    %875 = vmatprep.subr.mxu0 0.0
    %876 = vmatpush1.msra.mxu0 0.0
    %877 = vmatprep.subr.mxu0 0.0
    %878 = vmatpush1.msra.mxu0 0.0
    %879 = vmatprep.subr.mxu0 0.0
    %880 = vmatpush1.msra.mxu0 0.0
    %881 = vmatprep.subr.mxu0 0.0
    %882 = vmatpush1.msra.mxu0 0.0
    %883 = vmatprep.subr.mxu0 0.0
    %884 = vmatpush1.msra.mxu0 0.0
    %885 = vmatprep.subr.mxu0 0.0
    %886 = vmatpush1.msra.mxu0 0.0
    %887 = vmatprep.subr.mxu0 0.0
    %888 = vmatpush1.msra.mxu0 0.0
    %889 = vmatprep.subr.mxu0 0.0
    %890 = vmatpush1.msra.mxu0 0.0
    %891 = vmatprep.subr.mxu0 0.0
    %892 = vmatpush1.msra.mxu0 0.0
    %893 = vmatprep.subr.mxu0 0.0
    %894 = vmatpush1.msra.mxu0 0.0
    %895 = vmatprep.subr.mxu0 0.0
    %896 = vmatpush1.msra.mxu0 0.0
    %897 = vmatprep.subr.mxu0 0.0
    %898 = vmatpush1.msra.mxu0 0.0
    %899 = vmatprep.subr.mxu0 0.0
    %900 = vmatpush1.msra.mxu0 0.0
    %901 = vmatprep.subr.mxu0 0.0
    %902 = vmatpush1.msra.mxu0 0.0
    %903 = vmatprep.subr.mxu0 0.0
    %904 = vmatpush1.msra.mxu0 0.0
    %905 = vmatprep.subr.mxu0 0.0
    %906 = vmatpush1.msra.mxu0 0.0
    %907 = vmatprep.subr.mxu0 0.0
    %908 = vmatpush1.msra.mxu0 0.0
    %909 = vmatprep.subr.mxu0 0.0
    %910 = vmatpush1.msra.mxu0 0.0
    %911 = vmatprep.subr.mxu0 0.0
    %912 = vmatpush1.msra.mxu0 0.0
    %913 = vmatprep.subr.mxu0 0.0
    %914 = vmatpush1.msra.mxu0 0.0
    %915 = vmatprep.mubr.f32.mxu0 0.0
    %916 = vmatmul.mubr.f32.gmra.mrb[0].mxu0 %v849
    %v917 = vpop.f32.mrb[0].mxu0
    %v918 = vadd.f32 0.0, %v917
    %v919 = vpop.f32.mrb[0].mxu0
    %920 = vdwg.mxu0
    %v921 = vadd.f32 %v169, %v918
    %v922 = vxor.u32 %v921, 2147483648
    %v923 = vmul.f32 %v922, 1.442695
    %v924 = vpow.pop %v923
    %v925 = vadd.f32 %v924, 1.0
    %v926 = vrcp.pop %v925
    %v927 = vmul.f32 1.0, %v926
    %v928 = vtanh.pop %v921
    %v929 = vmul.f32 %v927, %v721
    %931 = vrot.lane.b32.xlu0 %v928, 64
    %v932 = vpop.permute.xlu0 %931
    %v934 = vmul.f32 %v927, %v932
    %936 = vrot.lane.b32.xlu0 %v934, 32
    %v937 = vpop.permute.xlu0 %936
    %v939 = vadd.f32 %v929, %v937
    %v940 = vtanh.pop %v939
    %942 = vrot.lane.b32.xlu0 %v940, 64
    %v943 = vpop.permute.xlu0 %942
    %v945 = vmul.f32 %v927, %v943
    %947 = vrot.lane.b32.xlu0 %v945, 32
    %v948 = vpop.permute.xlu0 %947
    %951 = vrot.lane.b32.xlu0 %v833, 64
    %v952 = vpop.permute.xlu0 %951
    %v954 = vsel %vm192, %v948, %v952
    %v956 = vsel %vm296, %v954, 0
    %958 = vmatprep.subr.mxu0 0.0
    %959 = vmatpush1.msra.mxu0 %v32
    %960 = vmatprep.subr.mxu0 0.0
    %961 = vmatpush1.msra.mxu0 %v33
    %962 = vmatprep.subr.mxu0 0.0
    %963 = vmatpush1.msra.mxu0 %v34
    %964 = vmatprep.subr.mxu0 0.0
    %965 = vmatpush1.msra.mxu0 %v35
    %966 = vmatprep.subr.mxu0 0.0
    %967 = vmatpush1.msra.mxu0 %v36
    %968 = vmatprep.subr.mxu0 0.0
    %969 = vmatpush1.msra.mxu0 %v37
    %970 = vmatprep.subr.mxu0 0.0
    %971 = vmatpush1.msra.mxu0 %v38
    %972 = vmatprep.subr.mxu0 0.0
    %973 = vmatpush1.msra.mxu0 %v39
    %974 = vmatprep.subr.mxu0 0.0
    %975 = vmatpush1.msra.mxu0 0.0
    %976 = vmatprep.subr.mxu0 0.0
    %977 = vmatpush1.msra.mxu0 0.0
    %978 = vmatprep.subr.mxu0 0.0
    %979 = vmatpush1.msra.mxu0 0.0
    %980 = vmatprep.subr.mxu0 0.0
    %981 = vmatpush1.msra.mxu0 0.0
    %982 = vmatprep.subr.mxu0 0.0
    %983 = vmatpush1.msra.mxu0 0.0
    %984 = vmatprep.subr.mxu0 0.0
    %985 = vmatpush1.msra.mxu0 0.0
    %986 = vmatprep.subr.mxu0 0.0
    %987 = vmatpush1.msra.mxu0 0.0
    %988 = vmatprep.subr.mxu0 0.0
    %989 = vmatpush1.msra.mxu0 0.0
    %990 = vmatprep.subr.mxu0 0.0
    %991 = vmatpush1.msra.mxu0 0.0
    %992 = vmatprep.subr.mxu0 0.0
    %993 = vmatpush1.msra.mxu0 0.0
    %994 = vmatprep.subr.mxu0 0.0
    %995 = vmatpush1.msra.mxu0 0.0
    %996 = vmatprep.subr.mxu0 0.0
    %997 = vmatpush1.msra.mxu0 0.0
    %998 = vmatprep.subr.mxu0 0.0
    %999 = vmatpush1.msra.mxu0 0.0
    %1000 = vmatprep.subr.mxu0 0.0
    %1001 = vmatpush1.msra.mxu0 0.0
    %1002 = vmatprep.subr.mxu0 0.0
    %1003 = vmatpush1.msra.mxu0 0.0
    %1004 = vmatprep.subr.mxu0 0.0
    %1005 = vmatpush1.msra.mxu0 0.0
    %1006 = vmatprep.subr.mxu0 0.0
    %1007 = vmatpush1.msra.mxu0 0.0
    %1008 = vmatprep.subr.mxu0 0.0
    %1009 = vmatpush1.msra.mxu0 0.0
    %1010 = vmatprep.subr.mxu0 0.0
    %1011 = vmatpush1.msra.mxu0 0.0
    %1012 = vmatprep.subr.mxu0 0.0
    %1013 = vmatpush1.msra.mxu0 0.0
    %1014 = vmatprep.subr.mxu0 0.0
    %1015 = vmatpush1.msra.mxu0 0.0
    %1016 = vmatprep.subr.mxu0 0.0
    %1017 = vmatpush1.msra.mxu0 0.0
    %1018 = vmatprep.subr.mxu0 0.0
    %1019 = vmatpush1.msra.mxu0 0.0
    %1020 = vmatprep.subr.mxu0 0.0
    %1021 = vmatpush1.msra.mxu0 0.0
    %1022 = vmatprep.mubr.f32.mxu0 0.0
    %1023 = vmatmul.mubr.f32.gmra.mrb[0].mxu0 %v956
    %v1024 = vpop.f32.mrb[0].mxu0
    %v1025 = vadd.f32 %v45, %v1024
    %v1026 = vpop.f32.mrb[0].mxu0
    %1027 = vdwg.mxu0
    %v1028 = vxor.u32 %v1025, 2147483648
    %v1029 = vmul.f32 %v1028, 1.442695
    %v1030 = vpow.pop %v1029
    %v1031 = vadd.f32 %v1030, 1.0
    %v1032 = vrcp.pop %v1031
    %v1033 = vmul.f32 1.0, %v1032
    %v1034 = vtanh.pop %v1025
    %v1035 = vmul.f32 %v1033, %v827
    %1037 = vrot.lane.b32.xlu0 %v1034, 64
    %v1038 = vpop.permute.xlu0 %1037
    %v1040 = vmul.f32 %v1033, %v1038
    %1042 = vrot.lane.b32.xlu0 %v1040, 32
    %v1043 = vpop.permute.xlu0 %1042
    %v1045 = vadd.f32 %v1035, %v1043
    %v1046 = vtanh.pop %v1045
    %1048 = vrot.lane.b32.xlu0 %v1046, 64
    %v1049 = vpop.permute.xlu0 %1048
    %v1051 = vmul.f32 %v1033, %v1049
    %v1052 = vmul.f32 %v1051, %v396
    %1054 = vrot.lane.b32.xlu0 %v1052, 32
    %v1055 = vpop.permute.xlu0 %1054
    %v1057 = vsel %vm192, %v1055, 0.0
    %1058 = vadd.xlane.f32.xlu0 %v1057
    %v1059 = vpop.xlane.xlu0 %1058
    %v1060 = vadd.f32 %v1059, %v49
    %1062 = vrot.lane.b32.xlu0 %v1060, 99
    %v1063 = vpop.permute.xlu0 %1062
    %vm1065 = vcmask 31768
    %1066 = vst.msk [vmem:[#allocation5] sm:$0xff] %vm1065, %v1063
    %v1067 = vsel %vm192, %v948, 0
    %1069 = vmatprep.subr.mxu0 0.0
    %1070 = vmatpush1.msra.mxu0 %v27
    %1071 = vmatprep.subr.mxu0 0.0
    %1072 = vmatpush1.msra.mxu0 %v28
    %1073 = vmatprep.subr.mxu0 0.0
    %1074 = vmatpush1.msra.mxu0 %v29
    %1075 = vmatprep.subr.mxu0 0.0
    %1076 = vmatpush1.msra.mxu0 %v30
    %1077 = vmatprep.subr.mxu0 0.0
    %1078 = vmatpush1.msra.mxu0 0.0
    %1079 = vmatprep.subr.mxu0 0.0
    %1080 = vmatpush1.msra.mxu0 0.0
    %1081 = vmatprep.subr.mxu0 0.0
    %1082 = vmatpush1.msra.mxu0 0.0
    %1083 = vmatprep.subr.mxu0 0.0
    %1084 = vmatpush1.msra.mxu0 0.0
    %1085 = vmatprep.subr.mxu0 0.0
    %1086 = vmatpush1.msra.mxu0 0.0
    %1087 = vmatprep.subr.mxu0 0.0
    %1088 = vmatpush1.msra.mxu0 0.0
    %1089 = vmatprep.subr.mxu0 0.0
    %1090 = vmatpush1.msra.mxu0 0.0
    %1091 = vmatprep.subr.mxu0 0.0
    %1092 = vmatpush1.msra.mxu0 0.0
    %1093 = vmatprep.subr.mxu0 0.0
    %1094 = vmatpush1.msra.mxu0 0.0
    %1095 = vmatprep.subr.mxu0 0.0
    %1096 = vmatpush1.msra.mxu0 0.0
    %1097 = vmatprep.subr.mxu0 0.0
    %1098 = vmatpush1.msra.mxu0 0.0
    %1099 = vmatprep.subr.mxu0 0.0
    %1100 = vmatpush1.msra.mxu0 0.0
    %1101 = vmatprep.subr.mxu0 0.0
    %1102 = vmatpush1.msra.mxu0 0.0
    %1103 = vmatprep.subr.mxu0 0.0
    %1104 = vmatpush1.msra.mxu0 0.0
    %1105 = vmatprep.subr.mxu0 0.0
    %1106 = vmatpush1.msra.mxu0 0.0
    %1107 = vmatprep.subr.mxu0 0.0
    %1108 = vmatpush1.msra.mxu0 0.0
    %1109 = vmatprep.subr.mxu0 0.0
    %1110 = vmatpush1.msra.mxu0 0.0
    %1111 = vmatprep.subr.mxu0 0.0
    %1112 = vmatpush1.msra.mxu0 0.0
    %1113 = vmatprep.subr.mxu0 0.0
    %1114 = vmatpush1.msra.mxu0 0.0
    %1115 = vmatprep.subr.mxu0 0.0
    %1116 = vmatpush1.msra.mxu0 0.0
    %1117 = vmatprep.subr.mxu0 0.0
    %1118 = vmatpush1.msra.mxu0 0.0
    %1119 = vmatprep.subr.mxu0 0.0
    %1120 = vmatpush1.msra.mxu0 0.0
    %1121 = vmatprep.subr.mxu0 0.0
    %1122 = vmatpush1.msra.mxu0 0.0
    %1123 = vmatprep.subr.mxu0 0.0
    %1124 = vmatpush1.msra.mxu0 0.0
    %1125 = vmatprep.subr.mxu0 0.0
    %1126 = vmatpush1.msra.mxu0 0.0
    %1127 = vmatprep.subr.mxu0 0.0
    %1128 = vmatpush1.msra.mxu0 0.0
    %1129 = vmatprep.subr.mxu0 0.0
    %1130 = vmatpush1.msra.mxu0 0.0
    %1131 = vmatprep.subr.mxu0 0.0
    %1132 = vmatpush1.msra.mxu0 0.0
    %1133 = vmatprep.mubr.f32.mxu0 0.0
    %1134 = vmatmul.mubr.f32.gmra.mrb[0].mxu0 %v1067
    %v1135 = vpop.f32.mrb[0].mxu0
    %v1136 = vadd.f32 0.0, %v1135
    %v1137 = vpop.f32.mrb[0].mxu0
    %1138 = vdwg.mxu0
    %v1139 = vadd.f32 %v174, %v1136
    %v1140 = vxor.u32 %v1139, 2147483648
    %v1141 = vmul.f32 %v1140, 1.442695
    %v1142 = vpow.pop %v1141
    %v1143 = vadd.f32 %v1142, 1.0
    %v1144 = vrcp.pop %v1143
    %v1145 = vmul.f32 1.0, %v1144
    %v1146 = vtanh.pop %v1139
    %v1147 = vmul.f32 %v1145, %v939
    %1149 = vrot.lane.b32.xlu0 %v1146, 64
    %v1150 = vpop.permute.xlu0 %1149
    %v1152 = vmul.f32 %v1145, %v1150
    %1154 = vrot.lane.b32.xlu0 %v1152, 32
    %v1155 = vpop.permute.xlu0 %1154
    %v1157 = vadd.f32 %v1147, %v1155
    %v1158 = vtanh.pop %v1157
    %1160 = vrot.lane.b32.xlu0 %v1158, 64
    %v1161 = vpop.permute.xlu0 %1160
    %v1163 = vmul.f32 %v1145, %v1161
    %1165 = vrot.lane.b32.xlu0 %v1163, 32
    %v1166 = vpop.permute.xlu0 %1165
    %1169 = vrot.lane.b32.xlu0 %v1051, 64
    %v1170 = vpop.permute.xlu0 %1169
    %v1172 = vsel %vm192, %v1166, %v1170
    %v1174 = vsel %vm296, %v1172, 0
    %1176 = vmatprep.subr.mxu0 0.0
    %1177 = vmatpush1.msra.mxu0 %v32
    %1178 = vmatprep.subr.mxu0 0.0
    %1179 = vmatpush1.msra.mxu0 %v33
    %1180 = vmatprep.subr.mxu0 0.0
    %1181 = vmatpush1.msra.mxu0 %v34
    %1182 = vmatprep.subr.mxu0 0.0
    %1183 = vmatpush1.msra.mxu0 %v35
    %1184 = vmatprep.subr.mxu0 0.0
    %1185 = vmatpush1.msra.mxu0 %v36
    %1186 = vmatprep.subr.mxu0 0.0
    %1187 = vmatpush1.msra.mxu0 %v37
    %1188 = vmatprep.subr.mxu0 0.0
    %1189 = vmatpush1.msra.mxu0 %v38
    %1190 = vmatprep.subr.mxu0 0.0
    %1191 = vmatpush1.msra.mxu0 %v39
    %1192 = vmatprep.subr.mxu0 0.0
    %1193 = vmatpush1.msra.mxu0 0.0
    %1194 = vmatprep.subr.mxu0 0.0
    %1195 = vmatpush1.msra.mxu0 0.0
    %1196 = vmatprep.subr.mxu0 0.0
    %1197 = vmatpush1.msra.mxu0 0.0
    %1198 = vmatprep.subr.mxu0 0.0
    %1199 = vmatpush1.msra.mxu0 0.0
    %1200 = vmatprep.subr.mxu0 0.0
    %1201 = vmatpush1.msra.mxu0 0.0
    %1202 = vmatprep.subr.mxu0 0.0
    %1203 = vmatpush1.msra.mxu0 0.0
    %1204 = vmatprep.subr.mxu0 0.0
    %1205 = vmatpush1.msra.mxu0 0.0
    %1206 = vmatprep.subr.mxu0 0.0
    %1207 = vmatpush1.msra.mxu0 0.0
    %1208 = vmatprep.subr.mxu0 0.0
    %1209 = vmatpush1.msra.mxu0 0.0
    %1210 = vmatprep.subr.mxu0 0.0
    %1211 = vmatpush1.msra.mxu0 0.0
    %1212 = vmatprep.subr.mxu0 0.0
    %1213 = vmatpush1.msra.mxu0 0.0
    %1214 = vmatprep.subr.mxu0 0.0
    %1215 = vmatpush1.msra.mxu0 0.0
    %1216 = vmatprep.subr.mxu0 0.0
    %1217 = vmatpush1.msra.mxu0 0.0
    %1218 = vmatprep.subr.mxu0 0.0
    %1219 = vmatpush1.msra.mxu0 0.0
    %1220 = vmatprep.subr.mxu0 0.0
    %1221 = vmatpush1.msra.mxu0 0.0
    %1222 = vmatprep.subr.mxu0 0.0
    %1223 = vmatpush1.msra.mxu0 0.0
    %1224 = vmatprep.subr.mxu0 0.0
    %1225 = vmatpush1.msra.mxu0 0.0
    %1226 = vmatprep.subr.mxu0 0.0
    %1227 = vmatpush1.msra.mxu0 0.0
    %1228 = vmatprep.subr.mxu0 0.0
    %1229 = vmatpush1.msra.mxu0 0.0
    %1230 = vmatprep.subr.mxu0 0.0
    %1231 = vmatpush1.msra.mxu0 0.0
    %1232 = vmatprep.subr.mxu0 0.0
    %1233 = vmatpush1.msra.mxu0 0.0
    %1234 = vmatprep.subr.mxu0 0.0
    %1235 = vmatpush1.msra.mxu0 0.0
    %1236 = vmatprep.subr.mxu0 0.0
    %1237 = vmatpush1.msra.mxu0 0.0
    %1238 = vmatprep.subr.mxu0 0.0
    %1239 = vmatpush1.msra.mxu0 0.0
    %1240 = vmatprep.mubr.f32.mxu0 0.0
    %1241 = vmatmul.mubr.f32.gmra.mrb[0].mxu0 %v1174
    %v1242 = vpop.f32.mrb[0].mxu0
    %v1243 = vadd.f32 %v45, %v1242
    %v1244 = vpop.f32.mrb[0].mxu0
    %1245 = vdwg.mxu0
    %v1246 = vxor.u32 %v1243, 2147483648
    %v1247 = vmul.f32 %v1246, 1.442695
    %v1248 = vpow.pop %v1247
    %v1249 = vadd.f32 %v1248, 1.0
    %v1250 = vrcp.pop %v1249
    %v1251 = vmul.f32 1.0, %v1250
    %v1252 = vtanh.pop %v1243
    %v1253 = vmul.f32 %v1251, %v1045
    %1255 = vrot.lane.b32.xlu0 %v1252, 64
    %v1256 = vpop.permute.xlu0 %1255
    %v1258 = vmul.f32 %v1251, %v1256
    %1260 = vrot.lane.b32.xlu0 %v1258, 32
    %v1261 = vpop.permute.xlu0 %1260
    %v1263 = vadd.f32 %v1253, %v1261
    %v1264 = vtanh.pop %v1263
    %1266 = vrot.lane.b32.xlu0 %v1264, 64
    %v1267 = vpop.permute.xlu0 %1266
    %v1269 = vmul.f32 %v1251, %v1267
    %v1270 = vmul.f32 %v1269, %v396
    %1272 = vrot.lane.b32.xlu0 %v1270, 32
    %v1273 = vpop.permute.xlu0 %1272
    %v1275 = vsel %vm192, %v1273, 0.0
    %1276 = vadd.xlane.f32.xlu0 %v1275
    %v1277 = vpop.xlane.xlu0 %1276
    %v1278 = vadd.f32 %v1277, %v49
    %1280 = vrot.lane.b32.xlu0 %v1278, 100
    %v1281 = vpop.permute.xlu0 %1280
    %vm1283 = vcmask 39968
    %1284 = vst.msk [vmem:[#allocation5] sm:$0xff] %vm1283, %v1281
    %v1285 = vsel %vm192, %v1166, 0
    %1287 = vmatprep.subr.mxu0 0.0
    %1288 = vmatpush1.msra.mxu0 %v27
    %1289 = vmatprep.subr.mxu0 0.0
    %1290 = vmatpush1.msra.mxu0 %v28
    %1291 = vmatprep.subr.mxu0 0.0
    %1292 = vmatpush1.msra.mxu0 %v29
    %1293 = vmatprep.subr.mxu0 0.0
    %1294 = vmatpush1.msra.mxu0 %v30
    %1295 = vmatprep.subr.mxu0 0.0
    %1296 = vmatpush1.msra.mxu0 0.0
    %1297 = vmatprep.subr.mxu0 0.0
    %1298 = vmatpush1.msra.mxu0 0.0
    %1299 = vmatprep.subr.mxu0 0.0
    %1300 = vmatpush1.msra.mxu0 0.0
    %1301 = vmatprep.subr.mxu0 0.0
    %1302 = vmatpush1.msra.mxu0 0.0
    %1303 = vmatprep.subr.mxu0 0.0
    %1304 = vmatpush1.msra.mxu0 0.0
    %1305 = vmatprep.subr.mxu0 0.0
    %1306 = vmatpush1.msra.mxu0 0.0
    %1307 = vmatprep.subr.mxu0 0.0
    %1308 = vmatpush1.msra.mxu0 0.0
    %1309 = vmatprep.subr.mxu0 0.0
    %1310 = vmatpush1.msra.mxu0 0.0
    %1311 = vmatprep.subr.mxu0 0.0
    %1312 = vmatpush1.msra.mxu0 0.0
    %1313 = vmatprep.subr.mxu0 0.0
    %1314 = vmatpush1.msra.mxu0 0.0
    %1315 = vmatprep.subr.mxu0 0.0
    %1316 = vmatpush1.msra.mxu0 0.0
    %1317 = vmatprep.subr.mxu0 0.0
    %1318 = vmatpush1.msra.mxu0 0.0
    %1319 = vmatprep.subr.mxu0 0.0
    %1320 = vmatpush1.msra.mxu0 0.0
    %1321 = vmatprep.subr.mxu0 0.0
    %1322 = vmatpush1.msra.mxu0 0.0
    %1323 = vmatprep.subr.mxu0 0.0
    %1324 = vmatpush1.msra.mxu0 0.0
    %1325 = vmatprep.subr.mxu0 0.0
    %1326 = vmatpush1.msra.mxu0 0.0
    %1327 = vmatprep.subr.mxu0 0.0
    %1328 = vmatpush1.msra.mxu0 0.0
    %1329 = vmatprep.subr.mxu0 0.0
    %1330 = vmatpush1.msra.mxu0 0.0
    %1331 = vmatprep.subr.mxu0 0.0
    %1332 = vmatpush1.msra.mxu0 0.0
    %1333 = vmatprep.subr.mxu0 0.0
    %1334 = vmatpush1.msra.mxu0 0.0
    %1335 = vmatprep.subr.mxu0 0.0
    %1336 = vmatpush1.msra.mxu0 0.0
    %1337 = vmatprep.subr.mxu0 0.0
    %1338 = vmatpush1.msra.mxu0 0.0
    %1339 = vmatprep.subr.mxu0 0.0
    %1340 = vmatpush1.msra.mxu0 0.0
    %1341 = vmatprep.subr.mxu0 0.0
    %1342 = vmatpush1.msra.mxu0 0.0
    %1343 = vmatprep.subr.mxu0 0.0
    %1344 = vmatpush1.msra.mxu0 0.0
    %1345 = vmatprep.subr.mxu0 0.0
    %1346 = vmatpush1.msra.mxu0 0.0
    %1347 = vmatprep.subr.mxu0 0.0
    %1348 = vmatpush1.msra.mxu0 0.0
    %1349 = vmatprep.subr.mxu0 0.0
    %1350 = vmatpush1.msra.mxu0 0.0
    %1351 = vmatprep.mubr.f32.mxu0 0.0
    %1352 = vmatmul.mubr.f32.gmra.mrb[0].mxu0 %v1285
    %v1353 = vpop.f32.mrb[0].mxu0
    %v1354 = vadd.f32 0.0, %v1353
    %v1355 = vpop.f32.mrb[0].mxu0
    %1356 = vdwg.mxu0
    %v1357 = vadd.f32 %v179, %v1354
    %v1358 = vxor.u32 %v1357, 2147483648
    %v1359 = vmul.f32 %v1358, 1.442695
    %v1360 = vpow.pop %v1359
    %v1361 = vadd.f32 %v1360, 1.0
    %v1362 = vrcp.pop %v1361
    %v1363 = vmul.f32 1.0, %v1362
    %v1364 = vtanh.pop %v1357
    %v1365 = vmul.f32 %v1363, %v1157
    %1367 = vrot.lane.b32.xlu0 %v1364, 64
    %v1368 = vpop.permute.xlu0 %1367
    %v1370 = vmul.f32 %v1363, %v1368
    %1372 = vrot.lane.b32.xlu0 %v1370, 32
    %v1373 = vpop.permute.xlu0 %1372
    %v1375 = vadd.f32 %v1365, %v1373
    %v1376 = vtanh.pop %v1375
    %1378 = vrot.lane.b32.xlu0 %v1376, 64
    %v1379 = vpop.permute.xlu0 %1378
    %v1381 = vmul.f32 %v1363, %v1379
    %1383 = vrot.lane.b32.xlu0 %v1381, 32
    %v1384 = vpop.permute.xlu0 %1383
    %1387 = vrot.lane.b32.xlu0 %v1269, 64
    %v1388 = vpop.permute.xlu0 %1387
    %v1390 = vsel %vm192, %v1384, %v1388
    %v1392 = vsel %vm296, %v1390, 0
    %1394 = vmatprep.subr.mxu0 0.0
    %1395 = vmatpush1.msra.mxu0 %v32
    %1396 = vmatprep.subr.mxu0 0.0
    %1397 = vmatpush1.msra.mxu0 %v33
    %1398 = vmatprep.subr.mxu0 0.0
    %1399 = vmatpush1.msra.mxu0 %v34
    %1400 = vmatprep.subr.mxu0 0.0
    %1401 = vmatpush1.msra.mxu0 %v35
    %1402 = vmatprep.subr.mxu0 0.0
    %1403 = vmatpush1.msra.mxu0 %v36
    %1404 = vmatprep.subr.mxu0 0.0
    %1405 = vmatpush1.msra.mxu0 %v37
    %1406 = vmatprep.subr.mxu0 0.0
    %1407 = vmatpush1.msra.mxu0 %v38
    %1408 = vmatprep.subr.mxu0 0.0
    %1409 = vmatpush1.msra.mxu0 %v39
    %1410 = vmatprep.subr.mxu0 0.0
    %1411 = vmatpush1.msra.mxu0 0.0
    %1412 = vmatprep.subr.mxu0 0.0
    %1413 = vmatpush1.msra.mxu0 0.0
    %1414 = vmatprep.subr.mxu0 0.0
    %1415 = vmatpush1.msra.mxu0 0.0
    %1416 = vmatprep.subr.mxu0 0.0
    %1417 = vmatpush1.msra.mxu0 0.0
    %1418 = vmatprep.subr.mxu0 0.0
    %1419 = vmatpush1.msra.mxu0 0.0
    %1420 = vmatprep.subr.mxu0 0.0
    %1421 = vmatpush1.msra.mxu0 0.0
    %1422 = vmatprep.subr.mxu0 0.0
    %1423 = vmatpush1.msra.mxu0 0.0
    %1424 = vmatprep.subr.mxu0 0.0
    %1425 = vmatpush1.msra.mxu0 0.0
    %1426 = vmatprep.subr.mxu0 0.0
    %1427 = vmatpush1.msra.mxu0 0.0
    %1428 = vmatprep.subr.mxu0 0.0
    %1429 = vmatpush1.msra.mxu0 0.0
    %1430 = vmatprep.subr.mxu0 0.0
    %1431 = vmatpush1.msra.mxu0 0.0
    %1432 = vmatprep.subr.mxu0 0.0
    %1433 = vmatpush1.msra.mxu0 0.0
    %1434 = vmatprep.subr.mxu0 0.0
    %1435 = vmatpush1.msra.mxu0 0.0
    %1436 = vmatprep.subr.mxu0 0.0
    %1437 = vmatpush1.msra.mxu0 0.0
    %1438 = vmatprep.subr.mxu0 0.0
    %1439 = vmatpush1.msra.mxu0 0.0
    %1440 = vmatprep.subr.mxu0 0.0
    %1441 = vmatpush1.msra.mxu0 0.0
    %1442 = vmatprep.subr.mxu0 0.0
    %1443 = vmatpush1.msra.mxu0 0.0
    %1444 = vmatprep.subr.mxu0 0.0
    %1445 = vmatpush1.msra.mxu0 0.0
    %1446 = vmatprep.subr.mxu0 0.0
    %1447 = vmatpush1.msra.mxu0 0.0
    %1448 = vmatprep.subr.mxu0 0.0
    %1449 = vmatpush1.msra.mxu0 0.0
    %1450 = vmatprep.subr.mxu0 0.0
    %1451 = vmatpush1.msra.mxu0 0.0
    %1452 = vmatprep.subr.mxu0 0.0
    %1453 = vmatpush1.msra.mxu0 0.0
    %1454 = vmatprep.subr.mxu0 0.0
    %1455 = vmatpush1.msra.mxu0 0.0
    %1456 = vmatprep.subr.mxu0 0.0
    %1457 = vmatpush1.msra.mxu0 0.0
    %1458 = vmatprep.mubr.f32.mxu0 0.0
    %1459 = vmatmul.mubr.f32.gmra.mrb[0].mxu0 %v1392
    %v1460 = vpop.f32.mrb[0].mxu0
    %v1461 = vadd.f32 %v45, %v1460
    %v1462 = vpop.f32.mrb[0].mxu0
    %1463 = vdwg.mxu0
    %v1464 = vxor.u32 %v1461, 2147483648
    %v1465 = vmul.f32 %v1464, 1.442695
    %v1466 = vpow.pop %v1465
    %v1467 = vadd.f32 %v1466, 1.0
    %v1468 = vrcp.pop %v1467
    %v1469 = vmul.f32 1.0, %v1468
    %v1470 = vtanh.pop %v1461
    %v1471 = vmul.f32 %v1469, %v1263
    %1473 = vrot.lane.b32.xlu0 %v1470, 64
    %v1474 = vpop.permute.xlu0 %1473
    %v1476 = vmul.f32 %v1469, %v1474
    %1478 = vrot.lane.b32.xlu0 %v1476, 32
    %v1479 = vpop.permute.xlu0 %1478
    %v1481 = vadd.f32 %v1471, %v1479
    %v1482 = vtanh.pop %v1481
    %1484 = vrot.lane.b32.xlu0 %v1482, 64
    %v1485 = vpop.permute.xlu0 %1484
    %v1487 = vmul.f32 %v1469, %v1485
    %v1488 = vmul.f32 %v1487, %v396
    %1490 = vrot.lane.b32.xlu0 %v1488, 32
    %v1491 = vpop.permute.xlu0 %1490
    %v1493 = vsel %vm192, %v1491, 0.0
    %1494 = vadd.xlane.f32.xlu0 %v1493
    %v1495 = vpop.xlane.xlu0 %1494
    %v1496 = vadd.f32 %v1495, %v49
    %1498 = vrot.lane.b32.xlu0 %v1496, 101
    %v1499 = vpop.permute.xlu0 %1498
    %vm1501 = vcmask 48168
    %1502 = vst.msk [vmem:[#allocation5] sm:$0xff] %vm1501, %v1499
    %v1503 = vsel %vm192, %v1384, 0
    %1505 = vmatprep.subr.mxu0 0.0
    %1506 = vmatpush1.msra.mxu0 %v27
    %1507 = vmatprep.subr.mxu0 0.0
    %1508 = vmatpush1.msra.mxu0 %v28
    %1509 = vmatprep.subr.mxu0 0.0
    %1510 = vmatpush1.msra.mxu0 %v29
    %1511 = vmatprep.subr.mxu0 0.0
    %1512 = vmatpush1.msra.mxu0 %v30
    %1513 = vmatprep.subr.mxu0 0.0
    %1514 = vmatpush1.msra.mxu0 0.0
    %1515 = vmatprep.subr.mxu0 0.0
    %1516 = vmatpush1.msra.mxu0 0.0
    %1517 = vmatprep.subr.mxu0 0.0
    %1518 = vmatpush1.msra.mxu0 0.0
    %1519 = vmatprep.subr.mxu0 0.0
    %1520 = vmatpush1.msra.mxu0 0.0
    %1521 = vmatprep.subr.mxu0 0.0
    %1522 = vmatpush1.msra.mxu0 0.0
    %1523 = vmatprep.subr.mxu0 0.0
    %1524 = vmatpush1.msra.mxu0 0.0
    %1525 = vmatprep.subr.mxu0 0.0
    %1526 = vmatpush1.msra.mxu0 0.0
    %1527 = vmatprep.subr.mxu0 0.0
    %1528 = vmatpush1.msra.mxu0 0.0
    %1529 = vmatprep.subr.mxu0 0.0
    %1530 = vmatpush1.msra.mxu0 0.0
    %1531 = vmatprep.subr.mxu0 0.0
    %1532 = vmatpush1.msra.mxu0 0.0
    %1533 = vmatprep.subr.mxu0 0.0
    %1534 = vmatpush1.msra.mxu0 0.0
    %1535 = vmatprep.subr.mxu0 0.0
    %1536 = vmatpush1.msra.mxu0 0.0
    %1537 = vmatprep.subr.mxu0 0.0
    %1538 = vmatpush1.msra.mxu0 0.0
    %1539 = vmatprep.subr.mxu0 0.0
    %1540 = vmatpush1.msra.mxu0 0.0
    %1541 = vmatprep.subr.mxu0 0.0
    %1542 = vmatpush1.msra.mxu0 0.0
    %1543 = vmatprep.subr.mxu0 0.0
    %1544 = vmatpush1.msra.mxu0 0.0
    %1545 = vmatprep.subr.mxu0 0.0
    %1546 = vmatpush1.msra.mxu0 0.0
    %1547 = vmatprep.subr.mxu0 0.0
    %1548 = vmatpush1.msra.mxu0 0.0
    %1549 = vmatprep.subr.mxu0 0.0
    %1550 = vmatpush1.msra.mxu0 0.0
    %1551 = vmatprep.subr.mxu0 0.0
    %1552 = vmatpush1.msra.mxu0 0.0
    %1553 = vmatprep.subr.mxu0 0.0
    %1554 = vmatpush1.msra.mxu0 0.0
    %1555 = vmatprep.subr.mxu0 0.0
    %1556 = vmatpush1.msra.mxu0 0.0
    %1557 = vmatprep.subr.mxu0 0.0
    %1558 = vmatpush1.msra.mxu0 0.0
    %1559 = vmatprep.subr.mxu0 0.0
    %1560 = vmatpush1.msra.mxu0 0.0
    %1561 = vmatprep.subr.mxu0 0.0
    %1562 = vmatpush1.msra.mxu0 0.0
    %1563 = vmatprep.subr.mxu0 0.0
    %1564 = vmatpush1.msra.mxu0 0.0
    %1565 = vmatprep.subr.mxu0 0.0
    %1566 = vmatpush1.msra.mxu0 0.0
    %1567 = vmatprep.subr.mxu0 0.0
    %1568 = vmatpush1.msra.mxu0 0.0
    %1569 = vmatprep.mubr.f32.mxu0 0.0
    %1570 = vmatmul.mubr.f32.gmra.mrb[0].mxu0 %v1503
    %v1571 = vpop.f32.mrb[0].mxu0
    %v1572 = vadd.f32 0.0, %v1571
    %v1573 = vpop.f32.mrb[0].mxu0
    %1574 = vdwg.mxu0
    %v1575 = vadd.f32 %v184, %v1572
    %v1576 = vxor.u32 %v1575, 2147483648
    %v1577 = vmul.f32 %v1576, 1.442695
    %v1578 = vpow.pop %v1577
    %v1579 = vadd.f32 %v1578, 1.0
    %v1580 = vrcp.pop %v1579
    %v1581 = vmul.f32 1.0, %v1580
    %v1582 = vtanh.pop %v1575
    %v1583 = vmul.f32 %v1581, %v1375
    %1585 = vrot.lane.b32.xlu0 %v1582, 64
    %v1586 = vpop.permute.xlu0 %1585
    %v1588 = vmul.f32 %v1581, %v1586
    %1590 = vrot.lane.b32.xlu0 %v1588, 32
    %v1591 = vpop.permute.xlu0 %1590
    %v1593 = vadd.f32 %v1583, %v1591
    %v1594 = vtanh.pop %v1593
    %1596 = vrot.lane.b32.xlu0 %v1594, 64
    %v1597 = vpop.permute.xlu0 %1596
    %v1599 = vmul.f32 %v1581, %v1597
    %1601 = vrot.lane.b32.xlu0 %v1599, 32
    %v1602 = vpop.permute.xlu0 %1601
    %1605 = vrot.lane.b32.xlu0 %v1487, 64
    %v1606 = vpop.permute.xlu0 %1605
    %v1608 = vsel %vm192, %v1602, %v1606
    %v1610 = vsel %vm296, %v1608, 0
    %1612 = vmatprep.subr.mxu0 0.0
    %1613 = vmatpush1.msra.mxu0 %v32
    %1614 = vmatprep.subr.mxu0 0.0
    %1615 = vmatpush1.msra.mxu0 %v33
    %1616 = vmatprep.subr.mxu0 0.0
    %1617 = vmatpush1.msra.mxu0 %v34
    %1618 = vmatprep.subr.mxu0 0.0
    %1619 = vmatpush1.msra.mxu0 %v35
    %1620 = vmatprep.subr.mxu0 0.0
    %1621 = vmatpush1.msra.mxu0 %v36
    %1622 = vmatprep.subr.mxu0 0.0
    %1623 = vmatpush1.msra.mxu0 %v37
    %1624 = vmatprep.subr.mxu0 0.0
    %1625 = vmatpush1.msra.mxu0 %v38
    %1626 = vmatprep.subr.mxu0 0.0
    %1627 = vmatpush1.msra.mxu0 %v39
    %1628 = vmatprep.subr.mxu0 0.0
    %1629 = vmatpush1.msra.mxu0 0.0
    %1630 = vmatprep.subr.mxu0 0.0
    %1631 = vmatpush1.msra.mxu0 0.0
    %1632 = vmatprep.subr.mxu0 0.0
    %1633 = vmatpush1.msra.mxu0 0.0
    %1634 = vmatprep.subr.mxu0 0.0
    %1635 = vmatpush1.msra.mxu0 0.0
    %1636 = vmatprep.subr.mxu0 0.0
    %1637 = vmatpush1.msra.mxu0 0.0
    %1638 = vmatprep.subr.mxu0 0.0
    %1639 = vmatpush1.msra.mxu0 0.0
    %1640 = vmatprep.subr.mxu0 0.0
    %1641 = vmatpush1.msra.mxu0 0.0
    %1642 = vmatprep.subr.mxu0 0.0
    %1643 = vmatpush1.msra.mxu0 0.0
    %1644 = vmatprep.subr.mxu0 0.0
    %1645 = vmatpush1.msra.mxu0 0.0
    %1646 = vmatprep.subr.mxu0 0.0
    %1647 = vmatpush1.msra.mxu0 0.0
    %1648 = vmatprep.subr.mxu0 0.0
    %1649 = vmatpush1.msra.mxu0 0.0
    %1650 = vmatprep.subr.mxu0 0.0
    %1651 = vmatpush1.msra.mxu0 0.0
    %1652 = vmatprep.subr.mxu0 0.0
    %1653 = vmatpush1.msra.mxu0 0.0
    %1654 = vmatprep.subr.mxu0 0.0
    %1655 = vmatpush1.msra.mxu0 0.0
    %1656 = vmatprep.subr.mxu0 0.0
    %1657 = vmatpush1.msra.mxu0 0.0
    %1658 = vmatprep.subr.mxu0 0.0
    %1659 = vmatpush1.msra.mxu0 0.0
    %1660 = vmatprep.subr.mxu0 0.0
    %1661 = vmatpush1.msra.mxu0 0.0
    %1662 = vmatprep.subr.mxu0 0.0
    %1663 = vmatpush1.msra.mxu0 0.0
    %1664 = vmatprep.subr.mxu0 0.0
    %1665 = vmatpush1.msra.mxu0 0.0
    %1666 = vmatprep.subr.mxu0 0.0
    %1667 = vmatpush1.msra.mxu0 0.0
    %1668 = vmatprep.subr.mxu0 0.0
    %1669 = vmatpush1.msra.mxu0 0.0
    %1670 = vmatprep.subr.mxu0 0.0
    %1671 = vmatpush1.msra.mxu0 0.0
    %1672 = vmatprep.subr.mxu0 0.0
    %1673 = vmatpush1.msra.mxu0 0.0
    %1674 = vmatprep.subr.mxu0 0.0
    %1675 = vmatpush1.msra.mxu0 0.0
    %1676 = vmatprep.mubr.f32.mxu0 0.0
    %1677 = vmatmul.mubr.f32.gmra.mrb[0].mxu0 %v1610
    %v1678 = vpop.f32.mrb[0].mxu0
    %v1679 = vadd.f32 %v45, %v1678
    %v1680 = vpop.f32.mrb[0].mxu0
    %1681 = vdwg.mxu0
    %v1682 = vxor.u32 %v1679, 2147483648
    %v1683 = vmul.f32 %v1682, 1.442695
    %v1684 = vpow.pop %v1683
    %v1685 = vadd.f32 %v1684, 1.0
    %v1686 = vrcp.pop %v1685
    %v1687 = vmul.f32 1.0, %v1686
    %v1688 = vtanh.pop %v1679
    %v1689 = vmul.f32 %v1687, %v1481
    %1691 = vrot.lane.b32.xlu0 %v1688, 64
    %v1692 = vpop.permute.xlu0 %1691
    %v1694 = vmul.f32 %v1687, %v1692
    %1696 = vrot.lane.b32.xlu0 %v1694, 32
    %v1697 = vpop.permute.xlu0 %1696
    %v1699 = vadd.f32 %v1689, %v1697
    %v1700 = vtanh.pop %v1699
    %1702 = vrot.lane.b32.xlu0 %v1700, 64
    %v1703 = vpop.permute.xlu0 %1702
    %v1705 = vmul.f32 %v1687, %v1703
    %v1706 = vmul.f32 %v1705, %v396
    %1708 = vrot.lane.b32.xlu0 %v1706, 32
    %v1709 = vpop.permute.xlu0 %1708
    %v1711 = vsel %vm192, %v1709, 0.0
    %1712 = vadd.xlane.f32.xlu0 %v1711
    %v1713 = vpop.xlane.xlu0 %1712
    %v1714 = vadd.f32 %v1713, %v49
    %1716 = vrot.lane.b32.xlu0 %v1714, 102
    %v1717 = vpop.permute.xlu0 %1716
    %vm1719 = vcmask 56368
    %1720 = vst.msk [vmem:[#allocation5] sm:$0xff] %vm1719, %v1717
    %v1721 = vsel %vm192, %v1602, 0
    %1723 = vmatprep.subr.mxu0 0.0
    %1724 = vmatpush1.msra.mxu0 %v27
    %1725 = vmatprep.subr.mxu0 0.0
    %1726 = vmatpush1.msra.mxu0 %v28
    %1727 = vmatprep.subr.mxu0 0.0
    %1728 = vmatpush1.msra.mxu0 %v29
    %1729 = vmatprep.subr.mxu0 0.0
    %1730 = vmatpush1.msra.mxu0 %v30
    %1731 = vmatprep.subr.mxu0 0.0
    %1732 = vmatpush1.msra.mxu0 0.0
    %1733 = vmatprep.subr.mxu0 0.0
    %1734 = vmatpush1.msra.mxu0 0.0
    %1735 = vmatprep.subr.mxu0 0.0
    %1736 = vmatpush1.msra.mxu0 0.0
    %1737 = vmatprep.subr.mxu0 0.0
    %1738 = vmatpush1.msra.mxu0 0.0
    %1739 = vmatprep.subr.mxu0 0.0
    %1740 = vmatpush1.msra.mxu0 0.0
    %1741 = vmatprep.subr.mxu0 0.0
    %1742 = vmatpush1.msra.mxu0 0.0
    %1743 = vmatprep.subr.mxu0 0.0
    %1744 = vmatpush1.msra.mxu0 0.0
    %1745 = vmatprep.subr.mxu0 0.0
    %1746 = vmatpush1.msra.mxu0 0.0
    %1747 = vmatprep.subr.mxu0 0.0
    %1748 = vmatpush1.msra.mxu0 0.0
    %1749 = vmatprep.subr.mxu0 0.0
    %1750 = vmatpush1.msra.mxu0 0.0
    %1751 = vmatprep.subr.mxu0 0.0
    %1752 = vmatpush1.msra.mxu0 0.0
    %1753 = vmatprep.subr.mxu0 0.0
    %1754 = vmatpush1.msra.mxu0 0.0
    %1755 = vmatprep.subr.mxu0 0.0
    %1756 = vmatpush1.msra.mxu0 0.0
    %1757 = vmatprep.subr.mxu0 0.0
    %1758 = vmatpush1.msra.mxu0 0.0
    %1759 = vmatprep.subr.mxu0 0.0
    %1760 = vmatpush1.msra.mxu0 0.0
    %1761 = vmatprep.subr.mxu0 0.0
    %1762 = vmatpush1.msra.mxu0 0.0
    %1763 = vmatprep.subr.mxu0 0.0
    %1764 = vmatpush1.msra.mxu0 0.0
    %1765 = vmatprep.subr.mxu0 0.0
    %1766 = vmatpush1.msra.mxu0 0.0
    %1767 = vmatprep.subr.mxu0 0.0
    %1768 = vmatpush1.msra.mxu0 0.0
    %1769 = vmatprep.subr.mxu0 0.0
    %1770 = vmatpush1.msra.mxu0 0.0
    %1771 = vmatprep.subr.mxu0 0.0
    %1772 = vmatpush1.msra.mxu0 0.0
    %1773 = vmatprep.subr.mxu0 0.0
    %1774 = vmatpush1.msra.mxu0 0.0
    %1775 = vmatprep.subr.mxu0 0.0
    %1776 = vmatpush1.msra.mxu0 0.0
    %1777 = vmatprep.subr.mxu0 0.0
    %1778 = vmatpush1.msra.mxu0 0.0
    %1779 = vmatprep.subr.mxu0 0.0
    %1780 = vmatpush1.msra.mxu0 0.0
    %1781 = vmatprep.subr.mxu0 0.0
    %1782 = vmatpush1.msra.mxu0 0.0
    %1783 = vmatprep.subr.mxu0 0.0
    %1784 = vmatpush1.msra.mxu0 0.0
    %1785 = vmatprep.subr.mxu0 0.0
    %1786 = vmatpush1.msra.mxu0 0.0
    %1787 = vmatprep.mubr.f32.mxu0 0.0
    %1788 = vmatmul.mubr.f32.gmra.mrb[0].mxu0 %v1721
    %v1789 = vpop.f32.mrb[0].mxu0
    %v1790 = vadd.f32 0.0, %v1789
    %v1791 = vpop.f32.mrb[0].mxu0
    %1792 = vdwg.mxu0
    %v1793 = vadd.f32 %v189, %v1790
    %v1794 = vxor.u32 %v1793, 2147483648
    %v1795 = vmul.f32 %v1794, 1.442695
    %v1796 = vpow.pop %v1795
    %v1797 = vadd.f32 %v1796, 1.0
    %v1798 = vrcp.pop %v1797
    %v1799 = vmul.f32 1.0, %v1798
    %v1800 = vtanh.pop %v1793
    %v1801 = vmul.f32 %v1799, %v1593
    %1803 = vrot.lane.b32.xlu0 %v1800, 64
    %v1804 = vpop.permute.xlu0 %1803
    %v1806 = vmul.f32 %v1799, %v1804
    %1808 = vrot.lane.b32.xlu0 %v1806, 32
    %v1809 = vpop.permute.xlu0 %1808
    %v1811 = vadd.f32 %v1801, %v1809
    %v1812 = vtanh.pop %v1811
    %1814 = vrot.lane.b32.xlu0 %v1812, 64
    %v1815 = vpop.permute.xlu0 %1814
    %v1817 = vmul.f32 %v1799, %v1815
    %1819 = vrot.lane.b32.xlu0 %v1817, 32
    %v1820 = vpop.permute.xlu0 %1819
    %1823 = vrot.lane.b32.xlu0 %v1705, 64
    %v1824 = vpop.permute.xlu0 %1823
    %v1826 = vsel %vm192, %v1820, %v1824
    %v1828 = vsel %vm296, %v1826, 0
    %1830 = vmatprep.subr.mxu0 0.0
    %1831 = vmatpush1.msra.mxu0 %v32
    %1832 = vmatprep.subr.mxu0 0.0
    %1833 = vmatpush1.msra.mxu0 %v33
    %1834 = vmatprep.subr.mxu0 0.0
    %1835 = vmatpush1.msra.mxu0 %v34
    %1836 = vmatprep.subr.mxu0 0.0
    %1837 = vmatpush1.msra.mxu0 %v35
    %1838 = vmatprep.subr.mxu0 0.0
    %1839 = vmatpush1.msra.mxu0 %v36
    %1840 = vmatprep.subr.mxu0 0.0
    %1841 = vmatpush1.msra.mxu0 %v37
    %1842 = vmatprep.subr.mxu0 0.0
    %1843 = vmatpush1.msra.mxu0 %v38
    %1844 = vmatprep.subr.mxu0 0.0
    %1845 = vmatpush1.msra.mxu0 %v39
    %1846 = vmatprep.subr.mxu0 0.0
    %1847 = vmatpush1.msra.mxu0 0.0
    %1848 = vmatprep.subr.mxu0 0.0
    %1849 = vmatpush1.msra.mxu0 0.0
    %1850 = vmatprep.subr.mxu0 0.0
    %1851 = vmatpush1.msra.mxu0 0.0
    %1852 = vmatprep.subr.mxu0 0.0
    %1853 = vmatpush1.msra.mxu0 0.0
    %1854 = vmatprep.subr.mxu0 0.0
    %1855 = vmatpush1.msra.mxu0 0.0
    %1856 = vmatprep.subr.mxu0 0.0
    %1857 = vmatpush1.msra.mxu0 0.0
    %1858 = vmatprep.subr.mxu0 0.0
    %1859 = vmatpush1.msra.mxu0 0.0
    %1860 = vmatprep.subr.mxu0 0.0
    %1861 = vmatpush1.msra.mxu0 0.0
    %1862 = vmatprep.subr.mxu0 0.0
    %1863 = vmatpush1.msra.mxu0 0.0
    %1864 = vmatprep.subr.mxu0 0.0
    %1865 = vmatpush1.msra.mxu0 0.0
    %1866 = vmatprep.subr.mxu0 0.0
    %1867 = vmatpush1.msra.mxu0 0.0
    %1868 = vmatprep.subr.mxu0 0.0
    %1869 = vmatpush1.msra.mxu0 0.0
    %1870 = vmatprep.subr.mxu0 0.0
    %1871 = vmatpush1.msra.mxu0 0.0
    %1872 = vmatprep.subr.mxu0 0.0
    %1873 = vmatpush1.msra.mxu0 0.0
    %1874 = vmatprep.subr.mxu0 0.0
    %1875 = vmatpush1.msra.mxu0 0.0
    %1876 = vmatprep.subr.mxu0 0.0
    %1877 = vmatpush1.msra.mxu0 0.0
    %1878 = vmatprep.subr.mxu0 0.0
    %1879 = vmatpush1.msra.mxu0 0.0
    %1880 = vmatprep.subr.mxu0 0.0
    %1881 = vmatpush1.msra.mxu0 0.0
    %1882 = vmatprep.subr.mxu0 0.0
    %1883 = vmatpush1.msra.mxu0 0.0
    %1884 = vmatprep.subr.mxu0 0.0
    %1885 = vmatpush1.msra.mxu0 0.0
    %1886 = vmatprep.subr.mxu0 0.0
    %1887 = vmatpush1.msra.mxu0 0.0
    %1888 = vmatprep.subr.mxu0 0.0
    %1889 = vmatpush1.msra.mxu0 0.0
    %1890 = vmatprep.subr.mxu0 0.0
    %1891 = vmatpush1.msra.mxu0 0.0
    %1892 = vmatprep.subr.mxu0 0.0
    %1893 = vmatpush1.msra.mxu0 0.0
    %1894 = vmatprep.mubr.f32.mxu0 0.0
    %1895 = vmatmul.mubr.f32.gmra.mrb[0].mxu0 %v1828
    %v1896 = vpop.f32.mrb[0].mxu0
    %v1897 = vadd.f32 %v45, %v1896
    %v1898 = vpop.f32.mrb[0].mxu0
    %1899 = vdwg.mxu0
    %v1900 = vxor.u32 %v1897, 2147483648
    %v1901 = vmul.f32 %v1900, 1.442695
    %v1902 = vpow.pop %v1901
    %v1903 = vadd.f32 %v1902, 1.0
    %v1904 = vrcp.pop %v1903
    %v1905 = vmul.f32 1.0, %v1904
    %v1906 = vtanh.pop %v1897
    %v1907 = vmul.f32 %v1905, %v1699
    %1909 = vrot.lane.b32.xlu0 %v1906, 64
    %v1910 = vpop.permute.xlu0 %1909
    %v1912 = vmul.f32 %v1905, %v1910
    %1914 = vrot.lane.b32.xlu0 %v1912, 32
    %v1915 = vpop.permute.xlu0 %1914
    %v1917 = vadd.f32 %v1907, %v1915
    %v1918 = vtanh.pop %v1917
    %1920 = vrot.lane.b32.xlu0 %v1918, 64
    %v1921 = vpop.permute.xlu0 %1920
    %v1923 = vmul.f32 %v1905, %v1921
    %v1924 = vmul.f32 %v1923, %v396
    %1926 = vrot.lane.b32.xlu0 %v1924, 32
    %v1927 = vpop.permute.xlu0 %1926
    %v1929 = vsel %vm192, %v1927, 0.0
    %1930 = vadd.xlane.f32.xlu0 %v1929
    %v1931 = vpop.xlane.xlu0 %1930
    %v1932 = vadd.f32 %v1931, %v49
    %1934 = vrot.lane.b32.xlu0 %v1932, 103
    %v1935 = vpop.permute.xlu0 %1934
    %vm1937 = vcmask 64568
    %1938 = vst.msk [vmem:[#allocation5] sm:$0xff] %vm1937, %v1935
    // Predicated region
    $region14: #{tpu_custom_call.1} parent=1 // pred_check
      _
    $region15: #{tpu_custom_call.1} parent=1 // pred_check_branch
      %1940 = sbr.rel (0) target = $region17
    $region16: #{tpu_custom_call.1} parent=1 // pred_region
      %s1942 = ssub.s32 128, 128
      %1943 = vsyncadd [#allocation4], %s1942
      %s1945 = sshll.u32 [#allocation5], 4
      %s1946 = int_to_ptr.vmem [resolvable:$true] %s1945
      %1948 = dma.vmem_to_hbm [thread:$0]  %s1946, 128, %s2, [#allocation4]
    $region17: #{tpu_custom_call.1} parent=1 // pred_fallthru
      _
    // Predicated region
    $region18: #{tpu_custom_call.1} parent=1 // pred_check
      _
    $region19: #{tpu_custom_call.1} parent=1 // pred_check_branch
      %1950 = sbr.rel (0) target = $region21
    $region20: #{tpu_custom_call.1} parent=1 // pred_region
      %1951 = dma.done [#allocation4], 128
    $region21: #{tpu_custom_call.1} parent=1 // pred_fallthru
      _
    %1952 = vsyncpa [#allocation3], 1
    %1953 = vsyncpa [#allocation4], 1

</llo_original>
